<compile_context>
chip_gen: v5e
topology: v5e:2x2
jax: 0.10.0
libtpu: 0.0.40
codegen_flags: <defaults>
</compile_context>

<pallas_src>
import functools

import jax
import jax.numpy as jnp
from jax import lax
from jax.experimental import pallas as pl
from jax.experimental.pallas import tpu as pltpu

_MIB = 1024 * 1024
_VMEM_CAP = 32 * _MIB          # <= default scoped VMEM on v6e/v7x; half of physical v7x
_TILE_BUDGET = 20 * _MIB       # working-set budget for any single pallas_call


# ----------------------------------------------------------------------------
# Helpers
# ----------------------------------------------------------------------------
def _round_up(x, m):
    return ((x + m - 1) // m) * m


def _vmem_limit(need_bytes):
    return int(min(_VMEM_CAP, max(16 * _MIB, need_bytes + 8 * _MIB)))


def _pack_factor(cout, spatial):
    """Spatial positions sharing one 128-lane row (lane-dense, no channel padding
    when G*cout == 128).  Groups must not cross sample boundaries (SE pooling)."""
    g = max(1, 128 // cout)
    while g > 1 and spatial % g != 0:
        g -= 1
    return g


def _choose_tm(mg, k_big, c_pack, target=2048, budget=_TILE_BUDGET):
    """Row tile for the conv matmul: as large as possible under the VMEM budget
    (double-buffered bf16 patch + bf16 out + bf16 weight), preferring a divisor
    of mg so no row padding (and no post-kernel slice copy) is needed."""
    def ws(t):
        return 2 * t * k_big * 2 + 2 * t * c_pack * 2 + 2 * k_big * c_pack * 2
    tm = min(target, mg)
    while tm > 128 and ws(tm) > budget:
        tm //= 2
    tm = (tm // 128) * 128 if tm >= 128 else max(8, (tm // 8) * 8)
    for c in range(tm, 7, -8):
        if mg % c == 0:
            return c
    return tm


def _choose_s_chunk(s_rows, target=512):
    """Largest divisor of s_rows that is a multiple of 8 and <= target."""
    if s_rows <= target:
        return s_rows
    for c in range(target, 7, -1):
        if s_rows % c == 0 and c % 8 == 0:
            return c
    return s_rows


# ----------------------------------------------------------------------------
# Glue: im2col for 3-D convolution (done in bf16; column order matches the
# PyTorch weight flatten).
# TODO(synk): implicit GEMM (gather the k^3 taps inside the kernel via an extra
#             grid axis / scalar-prefetched offsets) would avoid materializing
#             the k^3-inflated patch matrix in HBM.
# ----------------------------------------------------------------------------
def im2col_3d(x, ksize, stride, padding):
    N, Cin, D, H, W = x.shape
    k, s, p = ksize, stride, padding
    xp = jnp.pad(x, ((0, 0), (0, 0), (p, p), (p, p), (p, p)))
    Do = (D + 2 * p - k) // s + 1
    Ho = (H + 2 * p - k) // s + 1
    Wo = (W + 2 * p - k) // s + 1
    cols = []
    for dz in range(k):
        for dy in range(k):
            for dx in range(k):
                cols.append(
                    xp[:, :,
                       dz:dz + (Do - 1) * s + 1:s,
                       dy:dy + (Ho - 1) * s + 1:s,
                       dx:dx + (Wo - 1) * s + 1:s])
    cols = jnp.stack(cols, axis=0)                    # (k^3, N, Cin, Do, Ho, Wo)
    cols = cols.transpose(1, 3, 4, 5, 2, 0)           # (N, Do, Ho, Wo, Cin, k^3)
    K = Cin * k * k * k
    return cols.reshape(N * Do * Ho * Wo, K), (Do, Ho, Wo)


# ----------------------------------------------------------------------------
# Kernel A: conv matmul (bf16 in, f32 acc, bf16 out) + bias, per-tile BN partials.
# ----------------------------------------------------------------------------
def conv_stats_kernel(p_ref, w_ref, b_ref, y_ref, sum_ref, sq_ref, *,
                      sub_rows, nsub):
    c_pack = sum_ref.shape[-1]
    bias = b_ref[...]                                  # hoisted out of the loop

    def body(j, carry):
        ssum, ssq = carry
        st = pl.multiple_of(j * sub_rows, sub_rows)
        acc = jnp.dot(p_ref[pl.ds(st, sub_rows), :], w_ref[...],
                      preferred_element_type=jnp.float32)
        y_ref[pl.ds(st, sub_rows), :] = (acc + bias).astype(y_ref.dtype)
        # Stats on the bias-shifted f32 accumulator (compensated single pass);
        # zero-padded rows contribute exactly 0.
        return (ssum + jnp.sum(acc, axis=0, keepdims=True),
                ssq + jnp.sum(acc * acc, axis=0, keepdims=True))

    zeros = jnp.zeros((1, c_pack), jnp.float32)
    ssum, ssq = lax.fori_loop(0, nsub, body, (zeros, zeros))
    sum_ref[...] = ssum.reshape(sum_ref.shape)
    sq_ref[...] = ssq.reshape(sq_ref.shape)


def conv_with_stats(p_big, w_big, bias_row, *, tm):
    mg_pad, k_big = p_big.shape
    c_pack = w_big.shape[1]
    grid_m = mg_pad // tm
    sub = min(128, tm)
    while tm % sub:
        sub -= 8
    kernel = functools.partial(conv_stats_kernel, sub_rows=sub, nsub=tm // sub)
    need = 2 * tm * k_big * 2 + 2 * tm * c_pack * 2 + 2 * k_big * c_pack * 2
    return pl.pallas_call(
        kernel,
        out_shape=(jax.ShapeDtypeStruct((mg_pad, c_pack), jnp.bfloat16),
                   jax.ShapeDtypeStruct((grid_m, 1, c_pack), jnp.float32),
                   jax.ShapeDtypeStruct((grid_m, 1, c_pack), jnp.float32)),
        grid_spec=pltpu.PrefetchScalarGridSpec(
            num_scalar_prefetch=0,
            grid=(grid_m,),
            in_specs=[pl.BlockSpec((tm, k_big), lambda i: (i, 0)),
                      pl.BlockSpec((k_big, c_pack), lambda i: (0, 0)),
                      pl.BlockSpec((1, c_pack), lambda i: (0, 0))],
            out_specs=[pl.BlockSpec((tm, c_pack), lambda i: (i, 0)),
                       pl.BlockSpec((1, 1, c_pack), lambda i: (i, 0, 0)),
                       pl.BlockSpec((1, 1, c_pack), lambda i: (i, 0, 0))]),
        compiler_params=pltpu.CompilerParams(
            dimension_semantics=("parallel",),        # per-tile partials -> megacore OK
            vmem_limit_bytes=_vmem_limit(need)),
    )(p_big, w_big, bias_row)


# ----------------------------------------------------------------------------
# Kernel B (fused): BN scale/shift + ReLU + SE squeeze + SE MLP + rescale.
# The per-sample activation lives in the revisited VMEM output block, so the
# N*S*C intermediate hits HBM exactly once (already gated).
# ----------------------------------------------------------------------------
def bn_relu_se_kernel(y_ref, scale_ref, shift_ref, w1_ref, b1_ref, w2_ref,
                      b2_ref, out_ref, pool_acc, *, s_chunk, n_chunks, inv_s):
    s = pl.program_id(1)

    @pl.when(s == 0)
    def _init():
        pool_acc[...] = jnp.zeros(pool_acc.shape, pool_acc.dtype)

    st = pl.multiple_of(s * s_chunk, s_chunk)
    a = jnp.maximum(
        y_ref[...].astype(jnp.float32) * scale_ref[...] + shift_ref[...], 0.0)
    out_ref[:, pl.ds(st, s_chunk), :] = a.astype(out_ref.dtype)
    pool_acc[...] += jnp.sum(a, axis=1)                # SE squeeze stays in VMEM

    @pl.when(s == n_chunks - 1)
    def _finalize():
        pooled = pool_acc[...] * inv_s                 # (1, Cpack) lane-tiled sums
        h = jnp.maximum(
            jnp.dot(pooled, w1_ref[...], preferred_element_type=jnp.float32)
            + b1_ref[...], 0.0)                        # (1, Crp); w1 row-tiled -> group sum folded in
        g = jax.nn.sigmoid(
            jnp.dot(h, w2_ref[...], preferred_element_type=jnp.float32)
            + b2_ref[...])                             # (1, Cpack), already lane-tiled gate
        gb = g.reshape(1, 1, -1)                       # loop-invariant (fori_loop: emitted once)

        def apply(c, carry):
            cst = pl.multiple_of(c * s_chunk, s_chunk)
            blk = out_ref[:, pl.ds(cst, s_chunk), :].astype(jnp.float32)
            out_ref[:, pl.ds(cst, s_chunk), :] = (blk * gb).astype(out_ref.dtype)
            return carry

        lax.fori_loop(0, n_chunks, apply, 0)


def bn_relu_se_fused(y_nsc, scale, shift, w1_big, b1p, w2_big, b2_big, *,
                     s_chunk, inv_s, vmem_need):
    N, s_rows, c_pack = y_nsc.shape
    crp = w1_big.shape[1]
    n_chunks = s_rows // s_chunk
    kernel = functools.partial(bn_relu_se_kernel, s_chunk=s_chunk,
                               n_chunks=n_chunks, inv_s=inv_s)
    return pl.pallas_call(
        kernel,
        out_shape=jax.ShapeDtypeStruct((N, s_rows, c_pack), jnp.bfloat16),
        grid_spec=pltpu.PrefetchScalarGridSpec(
            num_scalar_prefetch=0,
            grid=(N, n_chunks),
            in_specs=[pl.BlockSpec((1, s_chunk, c_pack), lambda n, s: (n, s, 0)),
                      pl.BlockSpec((1, 1, c_pack), lambda n, s: (0, 0, 0)),
                      pl.BlockSpec((1, 1, c_pack), lambda n, s: (0, 0, 0)),
                      pl.BlockSpec((c_pack, crp), lambda n, s: (0, 0)),
                      pl.BlockSpec((1, crp), lambda n, s: (0, 0)),
                      pl.BlockSpec((crp, c_pack), lambda n, s: (0, 0)),
                      pl.BlockSpec((1, c_pack), lambda n, s: (0, 0))],
            out_specs=pl.BlockSpec((1, s_rows, c_pack), lambda n, s: (n, 0, 0)),
            scratch_shapes=[pltpu.VMEM((1, c_pack), jnp.float32)]),
        compiler_params=pltpu.CompilerParams(
            dimension_semantics=("parallel", "arbitrary"),
            vmem_limit_bytes=_vmem_limit(vmem_need)),
    )(y_nsc, scale, shift, w1_big, b1p, w2_big, b2_big)


# ----------------------------------------------------------------------------
# Kernel B fallback (large S / v7x VMEM guard): streamed two-pass SE.
#   pass 1: BN+ReLU, bf16 activation + per-(n, chunk) pool partials (all-parallel grid)
#   pass 2: per-sample gated writeback (all-parallel grid)
# ----------------------------------------------------------------------------
def bn_relu_pool_kernel(y_ref, scale_ref, shift_ref, act_ref, pool_ref):
    a = jnp.maximum(
        y_ref[...].astype(jnp.float32) * scale_ref[...] + shift_ref[...], 0.0)
    act_ref[...] = a.astype(act_ref.dtype)
    pool_ref[...] = jnp.sum(a, axis=1, keepdims=True).reshape(pool_ref.shape)


def apply_gate_kernel(act_ref, gate_ref, out_ref):
    out_ref[...] = (act_ref[...].astype(jnp.float32) * gate_ref[...]).astype(out_ref.dtype)


def bn_relu_se_two_pass(y_nsc, scale, shift, w1_big, b1p, w2_big, b2_big, *,
                        s_chunk, inv_s):
    N, s_rows, c_pack = y_nsc.shape
    n_chunks = s_rows // s_chunk
    limit = _vmem_limit(6 * s_chunk * c_pack * 2)
    act, pool = pl.pallas_call(
        bn_relu_pool_kernel,
        out_shape=(jax.ShapeDtypeStruct((N, s_rows, c_pack), jnp.bfloat16),
                   jax.ShapeDtypeStruct((N, n_chunks, 1, c_pack), jnp.float32)),
        grid_spec=pltpu.PrefetchScalarGridSpec(
            num_scalar_prefetch=0,
            grid=(N, n_chunks),
            in_specs=[pl.BlockSpec((1, s_chunk, c_pack), lambda n, s: (n, s, 0)),
                      pl.BlockSpec((1, 1, c_pack), lambda n, s: (0, 0, 0)),
                      pl.BlockSpec((1, 1, c_pack), lambda n, s: (0, 0, 0))],
            out_specs=[pl.BlockSpec((1, s_chunk, c_pack), lambda n, s: (n, s, 0)),
                       pl.BlockSpec((1, 1, 1, c_pack), lambda n, s: (n, s, 0, 0))]),
        compiler_params=pltpu.CompilerParams(
            dimension_semantics=("parallel", "parallel"),
            vmem_limit_bytes=limit),
    )(y_nsc, scale, shift)

    # SE excitation on the tiny (N, Cpack) pooled sums: plain XLA is fine here.
    pooled = jnp.sum(pool, axis=(1, 2)) * inv_s
    hidden = jnp.maximum(pooled @ w1_big + b1p, 0.0)
    gate = jax.nn.sigmoid(hidden @ w2_big + b2_big).reshape(N, 1, c_pack)

    return pl.pallas_call(
        apply_gate_kernel,
        out_shape=jax.ShapeDtypeStruct((N, s_rows, c_pack), jnp.bfloat16),
        grid_spec=pltpu.PrefetchScalarGridSpec(
            num_scalar_prefetch=0,
            grid=(N, n_chunks),
            in_specs=[pl.BlockSpec((1, s_chunk, c_pack), lambda n, s: (n, s, 0)),
                      pl.BlockSpec((1, 1, c_pack), lambda n, s: (n, 0, 0))],
            out_specs=pl.BlockSpec((1, s_chunk, c_pack), lambda n, s: (n, s, 0))),
        compiler_params=pltpu.CompilerParams(
            dimension_semantics=("parallel", "parallel"),
            vmem_limit_bytes=limit),
    )(act, gate)


# ----------------------------------------------------------------------------
# Full forward (Conv3DforG; BatchNorm in training mode = batch statistics)
# ----------------------------------------------------------------------------
@functools.partial(jax.jit, static_argnames=("stride", "padding", "force_two_pass"))
def conv3d_for_g_forward(x, params, *, stride=1, padding=1, force_two_pass=False):
    w_conv, b_conv, gamma, beta, w1, b1, w2, b2 = params
    N = x.shape[0]
    Cout, _, k, _, _ = w_conv.shape
    Cr = w1.shape[1]
    eps = 1e-5

    # --- im2col in bf16 (conv operands go to the MXU as bf16 anyway) ---
    patches, (Do, Ho, Wo) = im2col_3d(x.astype(jnp.bfloat16), k, stride, padding)
    M, K = patches.shape
    S = Do * Ho * Wo

    # --- lane packing: G spatial positions per 128-lane row ---
    G = _pack_factor(Cout, S)
    GC = G * Cout
    Cpack = _round_up(GC, 128)
    Crp = _round_up(Cr, 128)
    Kbig = G * K
    Mg = M // G
    S_rows = S // G

    # Block-diagonal conv weight: (Mg, G*K) @ blockdiag(W,..,W) == per-position
    # conv matmul with identical MAC count but a G-times denser output stream.
    w_mat = w_conv.reshape(Cout, K).T.astype(jnp.float32)            # (K, Cout)
    eye_g = jnp.eye(G, dtype=jnp.float32)
    w_big = (eye_g[:, None, :, None] * w_mat[None, :, None, :]).reshape(Kbig, GC)
    w_big = jnp.pad(w_big, ((0, 0), (0, Cpack - GC))).astype(jnp.bfloat16)
    bias_big = jnp.pad(jnp.tile(b_conv, G), (0, Cpack - GC)).astype(jnp.float32)

    p_big = patches.reshape(Mg, Kbig)                                # free reshape
    tm = _choose_tm(Mg, Kbig, Cpack)
    Mg_pad = pl.cdiv(Mg, tm) * tm
    if Mg_pad != Mg:
        p_big = jnp.pad(p_big, ((0, Mg_pad - Mg), (0, 0)))

    conv_flat, psum, psq = conv_with_stats(p_big, w_big,
                                           bias_big.reshape(1, Cpack), tm=tm)

    # --- BatchNorm batch statistics (training mode, biased variance like torch) ---
    csum = jnp.sum(psum, axis=(0, 1))[:GC].reshape(G, Cout).sum(axis=0)
    csq = jnp.sum(psq, axis=(0, 1))[:GC].reshape(G, Cout).sum(axis=0)
    mean_s = csum / M
    var = jnp.maximum(csq / M - mean_s * mean_s, 0.0)   # clamp against f32 cancellation
    mean = mean_s + b_conv
    scale_c = gamma * lax.rsqrt(var + eps)
    shift_c = beta - mean * scale_c
    scale_big = jnp.pad(jnp.tile(scale_c, G), (0, Cpack - GC)).reshape(1, 1, Cpack)
    shift_big = jnp.pad(jnp.tile(shift_c, G), (0, Cpack - GC)).reshape(1, 1, Cpack)

    # --- SE weights: fold the lane-group reduction / broadcast into fc1 / fc2 ---
    w1_big = jnp.pad(jnp.tile(w1, (G, 1)),
                     ((0, Cpack - GC), (0, Crp - Cr))).astype(jnp.float32)
    b1p = jnp.pad(b1, (0, Crp - Cr)).astype(jnp.float32).reshape(1, Crp)
    w2_big = jnp.pad(jnp.tile(jnp.pad(w2, ((0, Crp - Cr), (0, 0))), (1, G)),
                     ((0, 0), (0, Cpack - GC))).astype(jnp.float32)
    b2_big = jnp.pad(jnp.tile(b2, G), (0, Cpack - GC)).astype(jnp.float32).reshape(1, Cpack)

    y_nsc = conv_flat[:Mg].reshape(N, S_rows, Cpack)    # no-op slice when tm | Mg
    s_chunk = _choose_s_chunk(S_rows)
    inv_s = 1.0 / float(S)

    # Fused kernel = 1 HBM read + 1 HBM write of the activation; guard its
    # VMEM-resident per-sample block for v7x's 64 MiB VMEM, else stream two-pass.
    resident = (2 * S_rows * Cpack * 2 + 4 * s_chunk * Cpack * 2
                + 2 * (Cpack * Crp + Crp * Cpack + 4 * Cpack) * 4)
    if force_two_pass or resident > _TILE_BUDGET:
        out_nsc = bn_relu_se_two_pass(y_nsc, scale_big, shift_big, w1_big, b1p,
                                      w2_big, b2_big, s_chunk=s_chunk, inv_s=inv_s)
    else:
        out_nsc = bn_relu_se_fused(y_nsc, scale_big, shift_big, w1_big, b1p,
                                   w2_big, b2_big, s_chunk=s_chunk, inv_s=inv_s,
                                   vmem_need=resident)

    # --- back to NCDHW (no channel strip needed when G*Cout == 128) ---
    if Cpack != GC:
        out_nsc = out_nsc[:, :, :GC]
    out = out_nsc.reshape(N, Do, Ho, Wo, Cout).transpose(0, 4, 1, 2, 3)
    return out.astype(jnp.float32)


# ----------------------------------------------------------------------------
# Pure-JAX reference for validation
# ----------------------------------------------------------------------------
def reference_forward(x, params, *, stride=1, padding=1):
    w_conv, b_conv, gamma, beta, w1, b1, w2, b2 = params
    eps = 1e-5
    y = lax.conv_general_dilated(
        x, w_conv, window_strides=(stride,) * 3,
        padding=[(padding, padding)] * 3,
        dimension_numbers=("NCDHW", "OIDHW", "NCDHW"))
    y = y + b_conv[None, :, None, None, None]
    mean = y.mean(axis=(0, 2, 3, 4))
    var = y.var(axis=(0, 2, 3, 4))                        # biased, like torch BN
    yn = (y - mean[None, :, None, None, None]) * lax.rsqrt(
        var + eps)[None, :, None, None, None]
    yn = yn * gamma[None, :, None, None, None] + beta[None, :, None, None, None]
    a = jnp.maximum(yn, 0.0)
    pooled = a.mean(axis=(2, 3, 4))                       # (N, Cout)
    h = jnp.maximum(pooled @ w1 + b1, 0.0)
    g = jax.nn.sigmoid(h @ w2 + b2)
    return a * g[:, :, None, None, None]


if __name__ == "__main__":
    # Shapes consistent with Conv3DforG(4, 32, 3, 1, 1, se=True)
    N, Cin, D, H, W = 2, 4, 16, 16, 16
    Cout, ksize, stride, padding = 32, 3, 1, 1
    Cr = Cout // 16                                        # SE reduction = 16

    key = jax.random.PRNGKey(0)
    ks = jax.random.split(key, 9)
    w_conv = 0.1 * jax.random.normal(ks[0], (Cout, Cin, ksize, ksize, ksize), jnp.float32)
    b_conv = 0.1 * jax.random.normal(ks[1], (Cout,), jnp.float32)
    gamma = 1.0 + 0.1 * jax.random.normal(ks[2], (Cout,), jnp.float32)
    beta = 0.1 * jax.random.normal(ks[3], (Cout,), jnp.float32)
    w1 = 0.3 * jax.random.normal(ks[4], (Cout, Cr), jnp.float32)   # fc1 (transposed)
    b1 = 0.1 * jax.random.normal(ks[5], (Cr,), jnp.float32)
    w2 = 0.3 * jax.random.normal(ks[6], (Cr, Cout), jnp.float32)   # fc2 (transposed)
    b2 = 0.1 * jax.random.normal(ks[7], (Cout,), jnp.float32)
    params = (w_conv, b_conv, gamma, beta, w1, b1, w2, b2)

    x = jax.random.normal(ks[8], (N, Cin, D, H, W), jnp.float32)

    ref = reference_forward(x, params, stride=stride, padding=padding)

    # Primary (fused) path.
    out = conv3d_for_g_forward(x, params, stride=stride, padding=padding)
    out = jax.block_until_ready(out)
    assert out.shape == ref.shape == (N, Cout, D, H, W)
    # Tolerance accounts for bf16 MXU inputs and bf16 intermediate/output streams.
    assert jnp.allclose(out, ref, rtol=2e-2, atol=2e-2), "fused path mismatch"

    # Also exercise the large-S / v7x-VMEM fallback (streamed two-pass SE).
    out2 = conv3d_for_g_forward(x, params, stride=stride, padding=padding,
                                force_two_pass=True)
    out2 = jax.block_until_ready(out2)
    assert jnp.allclose(out2, ref, rtol=2e-2, atol=2e-2), "two-pass path mismatch"

    print("KERNEL_OK")
</pallas_src>

<mosaic_0001>
module attributes {stable_mosaic.version = 11 : i64} {
  func.func @conv_stats_kernel(%arg0: i32, %arg1: memref<2048x432xbf16, #tpu.memory_space<vmem>>, %arg2: memref<432x128xbf16, #tpu.memory_space<vmem>>, %arg3: memref<1x128xf32, #tpu.memory_space<vmem>>, %arg4: memref<2048x128xbf16, #tpu.memory_space<vmem>>, %arg5: memref<1x1x128xf32, #tpu.memory_space<vmem>>, %arg6: memref<1x1x128xf32, #tpu.memory_space<vmem>>) attributes {dimension_semantics = [#tpu.dimension_semantics<parallel>], iteration_bounds = array<i64: 1>, scalar_prefetch = 0 : i64, scratch_operands = 0 : i64, tpu.core_type = #tpu.core_type<tc>, window_params = [{transform_indices = @transform_0, window_bounds = array<i64: 2048, 432>}, {pipeline_mode = #tpu.pipeline_mode<synchronous>, transform_indices = @transform_1, window_bounds = array<i64: 432, 128>}, {pipeline_mode = #tpu.pipeline_mode<synchronous>, transform_indices = @transform_2, window_bounds = array<i64: 1, 128>}, {transform_indices = @transform_3, window_bounds = array<i64: 2048, 128>}, {transform_indices = @transform_4, window_bounds = array<i64: 1, 1, 128>}, {transform_indices = @transform_5, window_bounds = array<i64: 1, 1, 128>}]} {
    %c0 = arith.constant 0 : index
    %c0_0 = arith.constant 0 : index
    %0 = vector.load %arg3[%c0, %c0_0] : memref<1x128xf32, #tpu.memory_space<vmem>>, vector<1x128xf32>
    %cst = arith.constant 0.000000e+00 : f32
    %1 = vector.broadcast %cst : f32 to vector<1x128xf32>
    %c0_i32 = arith.constant 0 : i32
    %c16_i32 = arith.constant 16 : i32
    %2 = arith.addi %c0_i32, %c16_i32 : i32
    %c1_i32 = arith.constant 1 : i32
    %3:2 = scf.for %arg7 = %c0_i32 to %2 step %c1_i32 iter_args(%arg8 = %1, %arg9 = %1) -> (vector<1x128xf32>, vector<1x128xf32>)  : i32 {
      %c128_i32 = arith.constant 128 : i32
      %8 = arith.muli %arg7, %c128_i32 : i32
      %9 = tpu.assume_multiple %8, 128 : i32
      %10 = arith.index_cast %9 : i32 to index
      %c0_8 = arith.constant 0 : index
      %11 = vector.load %arg1[%10, %c0_8] : memref<2048x432xbf16, #tpu.memory_space<vmem>>, vector<128x432xbf16>
      %c0_9 = arith.constant 0 : index
      %c0_10 = arith.constant 0 : index
      %12 = vector.load %arg2[%c0_9, %c0_10] : memref<432x128xbf16, #tpu.memory_space<vmem>>, vector<432x128xbf16>
      %cst_11 = arith.constant dense<0.000000e+00> : vector<128x128xf32>
      %13 = tpu.matmul %11, %12, %cst_11 {dimension_numbers = #tpu.dot_dimension_numbers<[1], [0], [0], [1], [0, 0, 1, 1], [], []>} : vector<128x432xbf16>, vector<432x128xbf16>, vector<128x128xf32> -> vector<128x128xf32>
      %14 = vector.broadcast %0 : vector<1x128xf32> to vector<128x128xf32>
      %15 = arith.addf %13, %14 : vector<128x128xf32>
      %16 = arith.truncf %15 : vector<128x128xf32> to vector<128x128xbf16>
      %17 = arith.index_cast %9 : i32 to index
      %c0_12 = arith.constant 0 : index
      %18 = vector.load %arg4[%17, %c0_12] : memref<2048x128xbf16, #tpu.memory_space<vmem>>, vector<128x128xbf16>
      tpu.vector_store %arg4[%17, %c0_12], %16 {strides = array<i32>} : memref<2048x128xbf16, #tpu.memory_space<vmem>>, vector<128x128xbf16>,
      %cst_13 = arith.constant dense<0.000000e+00> : vector<128xf32>
      %19 = vector.multi_reduction <add>, %13, %cst_13 [0] : vector<128x128xf32> to vector<128xf32>
      %20 = vector.shape_cast %19 : vector<128xf32> to vector<1x128xf32>
      %21 = arith.addf %arg8, %20 : vector<1x128xf32>
      %22 = arith.mulf %13, %13 : vector<128x128xf32>
      %cst_14 = arith.constant dense<0.000000e+00> : vector<128xf32>
      %23 = vector.multi_reduction <add>, %22, %cst_14 [0] : vector<128x128xf32> to vector<128xf32>
      %24 = vector.shape_cast %23 : vector<128xf32> to vector<1x128xf32>
      %25 = arith.addf %arg9, %24 : vector<1x128xf32>
      scf.yield %21, %25 : vector<1x128xf32>, vector<1x128xf32>
    }
    %c16_i32_1 = arith.constant 16 : i32
    %4 = vector.shape_cast %3#0 : vector<1x128xf32> to vector<1x1x128xf32>
    %c0_2 = arith.constant 0 : index
    %c0_3 = arith.constant 0 : index
    %c0_4 = arith.constant 0 : index
    %5 = vector.load %arg5[%c0_2, %c0_3, %c0_4] : memref<1x1x128xf32, #tpu.memory_space<vmem>>, vector<1x1x128xf32>
    tpu.vector_store %arg5[%c0_2, %c0_3, %c0_4], %4 {strides = array<i32>} : memref<1x1x128xf32, #tpu.memory_space<vmem>>, vector<1x1x128xf32>,
    %6 = vector.shape_cast %3#1 : vector<1x128xf32> to vector<1x1x128xf32>
    %c0_5 = arith.constant 0 : index
    %c0_6 = arith.constant 0 : index
    %c0_7 = arith.constant 0 : index
    %7 = vector.load %arg6[%c0_5, %c0_6, %c0_7] : memref<1x1x128xf32, #tpu.memory_space<vmem>>, vector<1x1x128xf32>
    tpu.vector_store %arg6[%c0_5, %c0_6, %c0_7], %6 {strides = array<i32>} : memref<1x1x128xf32, #tpu.memory_space<vmem>>, vector<1x1x128xf32>,
    return
  }
  func.func @transform_0(%arg0: i32) -> (i32, i32) {
    %c0_i32 = arith.constant 0 : i32
    %c0_i32_0 = arith.constant 0 : i32
    return %arg0, %c0_i32 : i32, i32
  }
  func.func @transform_1(%arg0: i32) -> (i32, i32) {
    %c0_i32 = arith.constant 0 : i32
    %c0_i32_0 = arith.constant 0 : i32
    %c0_i32_1 = arith.constant 0 : i32
    return %c0_i32, %c0_i32_0 : i32, i32
  }
  func.func @transform_2(%arg0: i32) -> (i32, i32) {
    %c0_i32 = arith.constant 0 : i32
    %c0_i32_0 = arith.constant 0 : i32
    %c0_i32_1 = arith.constant 0 : i32
    return %c0_i32, %c0_i32_0 : i32, i32
  }
  func.func @transform_3(%arg0: i32) -> (i32, i32) {
    %c0_i32 = arith.constant 0 : i32
    %c0_i32_0 = arith.constant 0 : i32
    return %arg0, %c0_i32 : i32, i32
  }
  func.func @transform_4(%arg0: i32) -> (i32, i32, i32) {
    %c0_i32 = arith.constant 0 : i32
    %c0_i32_0 = arith.constant 0 : i32
    %c0_i32_1 = arith.constant 0 : i32
    return %arg0, %c0_i32, %c0_i32_0 : i32, i32, i32
  }
  func.func @transform_5(%arg0: i32) -> (i32, i32, i32) {
    %c0_i32 = arith.constant 0 : i32
    %c0_i32_0 = arith.constant 0 : i32
    %c0_i32_1 = arith.constant 0 : i32
    return %arg0, %c0_i32, %c0_i32_0 : i32, i32, i32
  }
}

module attributes {stable_mosaic.version = 11 : i64} {
  func.func @bn_relu_se_kernel(%arg0: i32, %arg1: i32, %arg2: memref<1x512x128xbf16, #tpu.memory_space<vmem>>, %arg3: memref<1x1x128xf32, #tpu.memory_space<vmem>>, %arg4: memref<1x1x128xf32, #tpu.memory_space<vmem>>, %arg5: memref<128x128xf32, #tpu.memory_space<vmem>>, %arg6: memref<1x128xf32, #tpu.memory_space<vmem>>, %arg7: memref<128x128xf32, #tpu.memory_space<vmem>>, %arg8: memref<1x128xf32, #tpu.memory_space<vmem>>, %arg9: memref<1x1024x128xbf16, #tpu.memory_space<vmem>>, %arg10: memref<1x128xf32, #tpu.memory_space<vmem>>) attributes {dimension_semantics = [#tpu.dimension_semantics<parallel>, #tpu.dimension_semantics<arbitrary>], iteration_bounds = array<i64: 2, 2>, scalar_prefetch = 0 : i64, scratch_operands = 1 : i64, tpu.core_type = #tpu.core_type<tc>, window_params = [{transform_indices = @transform_0, window_bounds = array<i64: 1, 512, 128>}, {pipeline_mode = #tpu.pipeline_mode<synchronous>, transform_indices = @transform_1, window_bounds = array<i64: 1, 1, 128>}, {pipeline_mode = #tpu.pipeline_mode<synchronous>, transform_indices = @transform_2, window_bounds = array<i64: 1, 1, 128>}, {pipeline_mode = #tpu.pipeline_mode<synchronous>, transform_indices = @transform_3, window_bounds = array<i64: 128, 128>}, {pipeline_mode = #tpu.pipeline_mode<synchronous>, transform_indices = @transform_4, window_bounds = array<i64: 1, 128>}, {pipeline_mode = #tpu.pipeline_mode<synchronous>, transform_indices = @transform_5, window_bounds = array<i64: 128, 128>}, {pipeline_mode = #tpu.pipeline_mode<synchronous>, transform_indices = @transform_6, window_bounds = array<i64: 1, 128>}, {transform_indices = @transform_7, window_bounds = array<i64: 1, 1024, 128>}]} {
    %c0_i32 = arith.constant 0 : i32
    %0 = arith.cmpi eq, %arg1, %c0_i32 : i32
    %1 = arith.extui %0 : i1 to i32
    %c0_i32_0 = arith.constant 0 : i32
    %2 = arith.cmpi ne, %1, %c0_i32_0 : i32
    scf.if %2 {
      %cst_17 = arith.constant 0.000000e+00 : f32
      %25 = vector.broadcast %cst_17 : f32 to vector<1x128xf32>
      %c0_18 = arith.constant 0 : index
      %c0_19 = arith.constant 0 : index
      %26 = vector.load %arg10[%c0_18, %c0_19] : memref<1x128xf32, #tpu.memory_space<vmem>>, vector<1x128xf32>
      tpu.vector_store %arg10[%c0_18, %c0_19], %25 {strides = array<i32>} : memref<1x128xf32, #tpu.memory_space<vmem>>, vector<1x128xf32>,
    } else {
    }
    %c512_i32 = arith.constant 512 : i32
    %3 = arith.muli %arg1, %c512_i32 : i32
    %4 = tpu.assume_multiple %3, 512 : i32
    %c0 = arith.constant 0 : index
    %c0_1 = arith.constant 0 : index
    %c0_2 = arith.constant 0 : index
    %5 = vector.load %arg2[%c0, %c0_1, %c0_2] : memref<1x512x128xbf16, #tpu.memory_space<vmem>>, vector<1x512x128xbf16>
    %6 = arith.extf %5 : vector<1x512x128xbf16> to vector<1x512x128xf32>
    %c0_3 = arith.constant 0 : index
    %c0_4 = arith.constant 0 : index
    %c0_5 = arith.constant 0 : index
    %7 = vector.load %arg3[%c0_3, %c0_4, %c0_5] : memref<1x1x128xf32, #tpu.memory_space<vmem>>, vector<1x1x128xf32>
    %8 = vector.broadcast %7 : vector<1x1x128xf32> to vector<1x512x128xf32>
    %9 = arith.mulf %6, %8 : vector<1x512x128xf32>
    %c0_6 = arith.constant 0 : index
    %c0_7 = arith.constant 0 : index
    %c0_8 = arith.constant 0 : index
    %10 = vector.load %arg4[%c0_6, %c0_7, %c0_8] : memref<1x1x128xf32, #tpu.memory_space<vmem>>, vector<1x1x128xf32>
    %11 = vector.broadcast %10 : vector<1x1x128xf32> to vector<1x512x128xf32>
    %12 = arith.addf %9, %11 : vector<1x512x128xf32>
    %cst = arith.constant 0.000000e+00 : f32
    %13 = vector.broadcast %cst : f32 to vector<1x512x128xf32>
    %14 = arith.maximumf %12, %13 : vector<1x512x128xf32>
    %15 = arith.truncf %14 : vector<1x512x128xf32> to vector<1x512x128xbf16>
    %c0_9 = arith.constant 0 : index
    %16 = arith.index_cast %4 : i32 to index
    %c0_10 = arith.constant 0 : index
    %17 = vector.load %arg9[%c0_9, %16, %c0_10] : memref<1x1024x128xbf16, #tpu.memory_space<vmem>>, vector<1x512x128xbf16>
    tpu.vector_store %arg9[%c0_9, %16, %c0_10], %15 {strides = array<i32>} : memref<1x1024x128xbf16, #tpu.memory_space<vmem>>, vector<1x512x128xbf16>,
    %c0_11 = arith.constant 0 : index
    %c0_12 = arith.constant 0 : index
    %18 = vector.load %arg10[%c0_11, %c0_12] : memref<1x128xf32, #tpu.memory_space<vmem>>, vector<1x128xf32>
    %cst_13 = arith.constant dense<0.000000e+00> : vector<1x128xf32>
    %19 = vector.multi_reduction <add>, %14, %cst_13 [1] : vector<1x512x128xf32> to vector<1x128xf32>
    %20 = arith.addf %18, %19 : vector<1x128xf32>
    %c0_14 = arith.constant 0 : index
    %c0_15 = arith.constant 0 : index
    %21 = vector.load %arg10[%c0_14, %c0_15] : memref<1x128xf32, #tpu.memory_space<vmem>>, vector<1x128xf32>
    tpu.vector_store %arg10[%c0_14, %c0_15], %20 {strides = array<i32>} : memref<1x128xf32, #tpu.memory_space<vmem>>, vector<1x128xf32>,
    %c1_i32 = arith.constant 1 : i32
    %22 = arith.cmpi eq, %arg1, %c1_i32 : i32
    %23 = arith.extui %22 : i1 to i32
    %c0_i32_16 = arith.constant 0 : i32
    %24 = arith.cmpi ne, %23, %c0_i32_16 : i32
    scf.if %24 {
      %c0_17 = arith.constant 0 : index
      %c0_18 = arith.constant 0 : index
      %25 = vector.load %arg10[%c0_17, %c0_18] : memref<1x128xf32, #tpu.memory_space<vmem>>, vector<1x128xf32>
      %cst_19 = arith.constant 2.44140625E-4 : f32
      %26 = vector.broadcast %cst_19 : f32 to vector<1x128xf32>
      %27 = arith.mulf %25, %26 : vector<1x128xf32>
      %c0_20 = arith.constant 0 : index
      %c0_21 = arith.constant 0 : index
      %28 = vector.load %arg5[%c0_20, %c0_21] : memref<128x128xf32, #tpu.memory_space<vmem>>, vector<128x128xf32>
      %cst_22 = arith.constant dense<0.000000e+00> : vector<1x128xf32>
      %29 = tpu.matmul %27, %28, %cst_22 {dimension_numbers = #tpu.dot_dimension_numbers<[1], [0], [0], [1], [0, 0, 1, 1], [], []>} : vector<1x128xf32>, vector<128x128xf32>, vector<1x128xf32> -> vector<1x128xf32>
      %c0_23 = arith.constant 0 : index
      %c0_24 = arith.constant 0 : index
      %30 = vector.load %arg6[%c0_23, %c0_24] : memref<1x128xf32, #tpu.memory_space<vmem>>, vector<1x128xf32>
      %31 = arith.addf %29, %30 : vector<1x128xf32>
      %cst_25 = arith.constant 0.000000e+00 : f32
      %32 = vector.broadcast %cst_25 : f32 to vector<1x128xf32>
      %33 = arith.maximumf %31, %32 : vector<1x128xf32>
      %c0_26 = arith.constant 0 : index
      %c0_27 = arith.constant 0 : index
      %34 = vector.load %arg7[%c0_26, %c0_27] : memref<128x128xf32, #tpu.memory_space<vmem>>, vector<128x128xf32>
      %cst_28 = arith.constant dense<0.000000e+00> : vector<1x128xf32>
      %35 = tpu.matmul %33, %34, %cst_28 {dimension_numbers = #tpu.dot_dimension_numbers<[1], [0], [0], [1], [0, 0, 1, 1], [], []>} : vector<1x128xf32>, vector<128x128xf32>, vector<1x128xf32> -> vector<1x128xf32>
      %c0_29 = arith.constant 0 : index
      %c0_30 = arith.constant 0 : index
      %36 = vector.load %arg8[%c0_29, %c0_30] : memref<1x128xf32, #tpu.memory_space<vmem>>, vector<1x128xf32>
      %37 = arith.addf %35, %36 : vector<1x128xf32>
      %38 = arith.negf %37 : vector<1x128xf32>
      %39 = math.exp %38 : vector<1x128xf32>
      %cst_31 = arith.constant 1.000000e+00 : f32
      %40 = vector.broadcast %cst_31 : f32 to vector<1x128xf32>
      %41 = arith.addf %40, %39 : vector<1x128xf32>
      %42 = arith.divf %40, %41 : vector<1x128xf32>
      %43 = vector.shape_cast %42 : vector<1x128xf32> to vector<1x1x128xf32>
      %c0_i32_32 = arith.constant 0 : i32
      %c2_i32 = arith.constant 2 : i32
      %44 = arith.addi %c0_i32_32, %c2_i32 : i32
      %c1_i32_33 = arith.constant 1 : i32
      scf.for %arg11 = %c0_i32_32 to %44 step %c1_i32_33  : i32 {
        %c512_i32_35 = arith.constant 512 : i32
        %45 = arith.muli %arg11, %c512_i32_35 : i32
        %46 = tpu.assume_multiple %45, 512 : i32
        %c0_36 = arith.constant 0 : index
        %47 = arith.index_cast %46 : i32 to index
        %c0_37 = arith.constant 0 : index
        %48 = vector.load %arg9[%c0_36, %47, %c0_37] : memref<1x1024x128xbf16, #tpu.memory_space<vmem>>, vector<1x512x128xbf16>
        %49 = arith.extf %48 : vector<1x512x128xbf16> to vector<1x512x128xf32>
        %50 = vector.broadcast %43 : vector<1x1x128xf32> to vector<1x512x128xf32>
        %51 = arith.mulf %49, %50 : vector<1x512x128xf32>
        %52 = arith.truncf %51 : vector<1x512x128xf32> to vector<1x512x128xbf16>
        %c0_38 = arith.constant 0 : index
        %53 = arith.index_cast %46 : i32 to index
        %c0_39 = arith.constant 0 : index
        %54 = vector.load %arg9[%c0_38, %53, %c0_39] : memref<1x1024x128xbf16, #tpu.memory_space<vmem>>, vector<1x512x128xbf16>
        tpu.vector_store %arg9[%c0_38, %53, %c0_39], %52 {strides = array<i32>} : memref<1x1024x128xbf16, #tpu.memory_space<vmem>>, vector<1x512x128xbf16>,
      }
      %c2_i32_34 = arith.constant 2 : i32
    } else {
    }
    return
  }
  func.func @transform_0(%arg0: i32, %arg1: i32) -> (i32, i32, i32) {
    %c0_i32 = arith.constant 0 : i32
    %c0_i32_0 = arith.constant 0 : i32
    return %arg0, %arg1, %c0_i32 : i32, i32, i32
  }
  func.func @transform_1(%arg0: i32, %arg1: i32) -> (i32, i32, i32) {
    %c0_i32 = arith.constant 0 : i32
    %c0_i32_0 = arith.constant 0 : i32
    %c0_i32_1 = arith.constant 0 : i32
    %c0_i32_2 = arith.constant 0 : i32
    return %c0_i32, %c0_i32_0, %c0_i32_1 : i32, i32, i32
  }
  func.func @transform_2(%arg0: i32, %arg1: i32) -> (i32, i32, i32) {
    %c0_i32 = arith.constant 0 : i32
    %c0_i32_0 = arith.constant 0 : i32
    %c0_i32_1 = arith.constant 0 : i32
    %c0_i32_2 = arith.constant 0 : i32
    return %c0_i32, %c0_i32_0, %c0_i32_1 : i32, i32, i32
  }
  func.func @transform_3(%arg0: i32, %arg1: i32) -> (i32, i32) {
    %c0_i32 = arith.constant 0 : i32
    %c0_i32_0 = arith.constant 0 : i32
    %c0_i32_1 = arith.constant 0 : i32
    return %c0_i32, %c0_i32_0 : i32, i32
  }
  func.func @transform_4(%arg0: i32, %arg1: i32) -> (i32, i32) {
    %c0_i32 = arith.constant 0 : i32
    %c0_i32_0 = arith.constant 0 : i32
    %c0_i32_1 = arith.constant 0 : i32
    return %c0_i32, %c0_i32_0 : i32, i32
  }
  func.func @transform_5(%arg0: i32, %arg1: i32) -> (i32, i32) {
    %c0_i32 = arith.constant 0 : i32
    %c0_i32_0 = arith.constant 0 : i32
    %c0_i32_1 = arith.constant 0 : i32
    return %c0_i32, %c0_i32_0 : i32, i32
  }
  func.func @transform_6(%arg0: i32, %arg1: i32) -> (i32, i32) {
    %c0_i32 = arith.constant 0 : i32
    %c0_i32_0 = arith.constant 0 : i32
    %c0_i32_1 = arith.constant 0 : i32
    return %c0_i32, %c0_i32_0 : i32, i32
  }
  func.func @transform_7(%arg0: i32, %arg1: i32) -> (i32, i32, i32) {
    %c0_i32 = arith.constant 0 : i32
    %c0_i32_0 = arith.constant 0 : i32
    %c0_i32_1 = arith.constant 0 : i32
    return %arg0, %c0_i32, %c0_i32_0 : i32, i32, i32
  }
}

</mosaic_0001>

<llo_original>
// kernel: tile.33
$region0: #{tile.33}
  #allocation0 [shape = 's32[1]{0}', space=sflag, size = 0x4, scoped, tag = 'scoped memory for tile.33']
  %s0 = inlined_call_operand.vmem [shape: f32[32], index: 0, kind: input, shape index: {}]
  %s1 = inlined_call_operand.vmem [shape: f32[4,32], index: 1, kind: output, shape index: {}]
  // Predicated region
  $region2: #{tile.33} parent=0 // pred_check
    _
  $region3: #{tile.33} parent=0 // pred_check_branch
    %3 = sbr.rel (0) target = $region5
  $region4: #{tile.33} parent=0 // pred_region
    _
  $region5: #{tile.33} parent=0 // pred_fallthru
    _
  %v4 = vld [vmem:[%s0] ss:$0 sm:$0xff]
  %5 = vst [vmem:[%s1] sm:$0xf] %v4

// kernel: conv3d_for_g_forward.2
$region0: #{conv3d_for_g_forward.2}
  #allocation0 [shape = 'u32[]', space=smem, size = 0x4, offset = 0x4, fixed_abs, tag = 'smem constant byte address 0x4 - core index']
  #allocation1 [shape = 'u32[72,128]{1,0:T(1,128)}', space=vmem, size = 0x9000, scoped, tag = 'internal scratch']
  %s0 = inlined_call_operand.vmem [shape: bf16[2048,432], index: 0, kind: input, shape index: {}]
  %s1 = inlined_call_operand.vmem [shape: bf16[432,128], index: 1, kind: input, shape index: {}]
  %s2 = inlined_call_operand.vmem [shape: f32[1,128], index: 2, kind: input, shape index: {}]
  %s3 = inlined_call_operand.vmem [shape: bf16[2048,128], index: 3, kind: output, shape index: {0}]
  %s4 = inlined_call_operand.vmem [shape: f32[1,1,128], index: 4, kind: output, shape index: {1}]
  %s5 = inlined_call_operand.vmem [shape: f32[1,1,128], index: 5, kind: output, shape index: {2}]
  %6 = xla_tuple %s3, %s4, %s5
  %s7 = sld [smem:[#allocation0]]
  $region45: #{conv3d_for_g_forward.2} parent=0
    _
  %s9 = ssub.s32 1, %s7
  %s10 = scalar_select 0, %s9, %s7
  // Predicated region
  $region2: #{conv3d_for_g_forward.2} parent=0 // pred_check
    _
  $region3: #{conv3d_for_g_forward.2} parent=0 // pred_check_branch
    %12 = sbr.rel (0) target = $region5
  $region4: #{conv3d_for_g_forward.2} parent=0 // pred_region
    _
  $region5: #{conv3d_for_g_forward.2} parent=0 // pred_fallthru
    _
  // Predicated region
  $region6: #{conv3d_for_g_forward.2} parent=0 // pred_check
    _
  $region7: #{conv3d_for_g_forward.2} parent=0 // pred_check_branch
    %14 = sbr.rel (0) target = $region9
  $region8: #{conv3d_for_g_forward.2} parent=0 // pred_region
    _
  $region9: #{conv3d_for_g_forward.2} parent=0 // pred_fallthru
    _
  // Predicated region
  $region10: #{conv3d_for_g_forward.2} parent=0 // pred_check
    _
  $region11: #{conv3d_for_g_forward.2} parent=0 // pred_check_branch
    %16 = sbr.rel (0) target = $region13
  $region12: #{conv3d_for_g_forward.2} parent=0 // pred_region
    _
  $region13: #{conv3d_for_g_forward.2} parent=0 // pred_fallthru
    _
  %v18 = vld [vmem:[%s2] sm:$0x1]
  loop: start=0, step=1, limit=16
  $region14: #{conv3d_for_g_forward.2} parent=0 // loop_pre_header
    _
  $region15: #{conv3d_for_g_forward.2} parent=0 // loop_header
    %s20 = sphi 0, %s24
    %p21 = scmp.ge.s32.totalorder %s20, 16
    %v25 = vphi 0.0, %v728
    %v26 = vphi 0.0, %v766
  $region16: #{conv3d_for_g_forward.2} parent=0 // loop_header_branch
    %23 = sbr.rel (%p21) target = $region20
  $region17: #{conv3d_for_g_forward.2} parent=0 // loop_body
    %s27 = smul.u32 %s20, 128
    %s28 = sshra.s32 %s27, 3
    %s29 = sand.u32 %s27, 7
    %s30 = smul.u32 %s28, 4
    %s31 = smul.addr %s30, 4
    %s32 = scalar_lea.vmem %s0, %s31
    %v33 = vld [vmem:[%s32] sm:$0xff]
    %v34 = vld [vmem:[%s32 + $0x8] sm:$0xff]
    %v35 = vld [vmem:[%s32 + $0x10] sm:$0xff]
    %v36 = vld [vmem:[%s32 + $0x18] sm:$0xff]
    %v37 = vld [vmem:[%s32 + $0x20] sm:$0xff]
    %v38 = vld [vmem:[%s32 + $0x28] sm:$0xff]
    %v39 = vld [vmem:[%s32 + $0x30] sm:$0xff]
    %v40 = vld [vmem:[%s32 + $0x38] sm:$0xff]
    %v41 = vld [vmem:[%s32 + $0x40] sm:$0xff]
    %v42 = vld [vmem:[%s32 + $0x48] sm:$0xff]
    %v43 = vld [vmem:[%s32 + $0x50] sm:$0xff]
    %v44 = vld [vmem:[%s32 + $0x58] sm:$0xff]
    %v45 = vld [vmem:[%s32 + $0x60] sm:$0xff]
    %v46 = vld [vmem:[%s32 + $0x68] sm:$0xff]
    %v47 = vld [vmem:[%s32 + $0x70] sm:$0xff]
    %v48 = vld [vmem:[%s32 + $0x78] sm:$0xff]
    %v49 = vld [vmem:[%s32 + $0x80] sm:$0xff]
    %v50 = vld [vmem:[%s32 + $0x88] sm:$0xff]
    %v51 = vld [vmem:[%s32 + $0x90] sm:$0xff]
    %v52 = vld [vmem:[%s32 + $0x98] sm:$0xff]
    %v53 = vld [vmem:[%s32 + $0xa0] sm:$0xff]
    %v54 = vld [vmem:[%s32 + $0xa8] sm:$0xff]
    %v55 = vld [vmem:[%s32 + $0xb0] sm:$0xff]
    %v56 = vld [vmem:[%s32 + $0xb8] sm:$0xff]
    %v57 = vld [vmem:[%s32 + $0xc0] sm:$0xff]
    %v58 = vld [vmem:[%s32 + $0xc8] sm:$0xff]
    %v59 = vld [vmem:[%s32 + $0xd0] sm:$0xff]
    %v60 = vld [vmem:[%s32 + $0xd8] sm:$0xff]
    %v61 = vld [vmem:[%s32 + $0xe0] sm:$0xff]
    %v62 = vld [vmem:[%s32 + $0xe8] sm:$0xff]
    %v63 = vld [vmem:[%s32 + $0xf0] sm:$0xff]
    %v64 = vld [vmem:[%s32 + $0xf8] sm:$0xff]
    %v65 = vld [vmem:[%s1] sm:$0xf]
    %v66 = vld [vmem:[%s1 + $0x4] sm:$0xf]
    %v67 = vld [vmem:[%s1 + $0x8] sm:$0xf]
    %v68 = vld [vmem:[%s1 + $0xc] sm:$0xf]
    %v69 = vld [vmem:[%s1 + $0x10] sm:$0xf]
    %v70 = vld [vmem:[%s1 + $0x14] sm:$0xf]
    %v71 = vld [vmem:[%s1 + $0x18] sm:$0xf]
    %v72 = vld [vmem:[%s1 + $0x1c] sm:$0xf]
    %v73 = vld [vmem:[%s1 + $0x20] sm:$0xf]
    %v74 = vld [vmem:[%s1 + $0x24] sm:$0xf]
    %v75 = vld [vmem:[%s1 + $0x28] sm:$0xf]
    %v76 = vld [vmem:[%s1 + $0x2c] sm:$0xf]
    %v77 = vld [vmem:[%s1 + $0x30] sm:$0xf]
    %v78 = vld [vmem:[%s1 + $0x34] sm:$0xf]
    %v79 = vld [vmem:[%s1 + $0x38] sm:$0xf]
    %v80 = vld [vmem:[%s1 + $0x3c] sm:$0xf]
    %v81 = vld [vmem:[%s1 + $0x40] sm:$0xf]
    %v82 = vld [vmem:[%s1 + $0x44] sm:$0xf]
    %v83 = vld [vmem:[%s1 + $0x48] sm:$0xf]
    %v84 = vld [vmem:[%s1 + $0x4c] sm:$0xf]
    %v85 = vld [vmem:[%s1 + $0x50] sm:$0xf]
    %v86 = vld [vmem:[%s1 + $0x54] sm:$0xf]
    %v87 = vld [vmem:[%s1 + $0x58] sm:$0xf]
    %v88 = vld [vmem:[%s1 + $0x5c] sm:$0xf]
    %v89 = vld [vmem:[%s1 + $0x60] sm:$0xf]
    %v90 = vld [vmem:[%s1 + $0x64] sm:$0xf]
    %v91 = vld [vmem:[%s1 + $0x68] sm:$0xf]
    %v92 = vld [vmem:[%s1 + $0x6c] sm:$0xf]
    %v93 = vld [vmem:[%s1 + $0x70] sm:$0xf]
    %v94 = vld [vmem:[%s1 + $0x74] sm:$0xf]
    %v95 = vld [vmem:[%s1 + $0x78] sm:$0xf]
    %v96 = vld [vmem:[%s1 + $0x7c] sm:$0xf]
    %v97 = vld [vmem:[%s1 + $0x80] sm:$0xf]
    %v98 = vld [vmem:[%s1 + $0x84] sm:$0xf]
    %v99 = vld [vmem:[%s1 + $0x88] sm:$0xf]
    %v100 = vld [vmem:[%s1 + $0x8c] sm:$0xf]
    %v101 = vld [vmem:[%s1 + $0x90] sm:$0xf]
    %v102 = vld [vmem:[%s1 + $0x94] sm:$0xf]
    %v103 = vld [vmem:[%s1 + $0x98] sm:$0xf]
    %v104 = vld [vmem:[%s1 + $0x9c] sm:$0xf]
    %v105 = vld [vmem:[%s1 + $0xa0] sm:$0xf]
    %v106 = vld [vmem:[%s1 + $0xa4] sm:$0xf]
    %v107 = vld [vmem:[%s1 + $0xa8] sm:$0xf]
    %v108 = vld [vmem:[%s1 + $0xac] sm:$0xf]
    %v109 = vld [vmem:[%s1 + $0xb0] sm:$0xf]
    %v110 = vld [vmem:[%s1 + $0xb4] sm:$0xf]
    %v111 = vld [vmem:[%s1 + $0xb8] sm:$0xf]
    %v112 = vld [vmem:[%s1 + $0xbc] sm:$0xf]
    %v113 = vld [vmem:[%s1 + $0xc0] sm:$0xf]
    %v114 = vld [vmem:[%s1 + $0xc4] sm:$0xf]
    %v115 = vld [vmem:[%s1 + $0xc8] sm:$0xf]
    %v116 = vld [vmem:[%s1 + $0xcc] sm:$0xf]
    %v117 = vld [vmem:[%s1 + $0xd0] sm:$0xf]
    %v118 = vld [vmem:[%s1 + $0xd4] sm:$0xf]
    %v151 = vunpack.c.l.b16 %v33
    %v152 = vunpack.c.h.b16 %v33
    %v153 = vunpack.c.l.b16 %v34
    %v154 = vunpack.c.h.b16 %v34
    %v155 = vunpack.c.l.b16 %v35
    %v156 = vunpack.c.h.b16 %v35
    %v157 = vunpack.c.l.b16 %v36
    %v158 = vunpack.c.h.b16 %v36
    %v159 = vunpack.c.l.b16 %v37
    %v160 = vunpack.c.h.b16 %v37
    %v161 = vunpack.c.l.b16 %v38
    %v162 = vunpack.c.h.b16 %v38
    %v163 = vunpack.c.l.b16 %v39
    %v164 = vunpack.c.h.b16 %v39
    %v165 = vunpack.c.l.b16 %v40
    %v166 = vunpack.c.h.b16 %v40
    %v167 = vunpack.c.l.b16 %v41
    %v168 = vunpack.c.h.b16 %v41
    %v169 = vunpack.c.l.b16 %v42
    %v170 = vunpack.c.h.b16 %v42
    %v171 = vunpack.c.l.b16 %v43
    %v172 = vunpack.c.h.b16 %v43
    %v173 = vunpack.c.l.b16 %v44
    %v174 = vunpack.c.h.b16 %v44
    %v175 = vunpack.c.l.b16 %v45
    %v176 = vunpack.c.h.b16 %v45
    %v177 = vunpack.c.l.b16 %v46
    %v178 = vunpack.c.h.b16 %v46
    %v179 = vunpack.c.l.b16 %v47
    %v180 = vunpack.c.h.b16 %v47
    %v181 = vunpack.c.l.b16 %v48
    %v182 = vunpack.c.h.b16 %v48
    %v183 = vunpack.c.l.b16 %v49
    %v184 = vunpack.c.h.b16 %v49
    %v185 = vunpack.c.l.b16 %v50
    %v186 = vunpack.c.h.b16 %v50
    %v187 = vunpack.c.l.b16 %v51
    %v188 = vunpack.c.h.b16 %v51
    %v189 = vunpack.c.l.b16 %v52
    %v190 = vunpack.c.h.b16 %v52
    %v191 = vunpack.c.l.b16 %v53
    %v192 = vunpack.c.h.b16 %v53
    %v193 = vunpack.c.l.b16 %v54
    %v194 = vunpack.c.h.b16 %v54
    %v195 = vunpack.c.l.b16 %v55
    %v196 = vunpack.c.h.b16 %v55
    %v197 = vunpack.c.l.b16 %v56
    %v198 = vunpack.c.h.b16 %v56
    %v199 = vunpack.c.l.b16 %v57
    %v200 = vunpack.c.h.b16 %v57
    %v201 = vunpack.c.l.b16 %v58
    %v202 = vunpack.c.h.b16 %v58
    %v203 = vunpack.c.l.b16 %v59
    %v204 = vunpack.c.h.b16 %v59
    %v205 = vunpack.c.l.b16 %v60
    %v206 = vunpack.c.h.b16 %v60
    %v207 = vunpack.c.l.b16 %v61
    %v208 = vunpack.c.h.b16 %v61
    %v209 = vunpack.c.l.b16 %v62
    %v210 = vunpack.c.h.b16 %v62
    %v211 = vunpack.c.l.b16 %v63
    %v212 = vunpack.c.h.b16 %v63
    %v213 = vunpack.c.l.b16 %v64
    %v214 = vunpack.c.h.b16 %v64
    %v215 = vpack.c.b16 %v155, %v151
    %v216 = vpack.c.b16 %v156, %v152
    %v217 = vpack.c.b16 %v157, %v153
    %v218 = vpack.c.b16 %v158, %v154
    %v219 = vpack.c.b16 %v163, %v159
    %v220 = vpack.c.b16 %v164, %v160
    %v221 = vpack.c.b16 %v165, %v161
    %v222 = vpack.c.b16 %v166, %v162
    %v223 = vpack.c.b16 %v171, %v167
    %v224 = vpack.c.b16 %v172, %v168
    %v225 = vpack.c.b16 %v173, %v169
    %v226 = vpack.c.b16 %v174, %v170
    %v227 = vpack.c.b16 %v179, %v175
    %v228 = vpack.c.b16 %v180, %v176
    %v229 = vpack.c.b16 %v181, %v177
    %v230 = vpack.c.b16 %v182, %v178
    %v231 = vpack.c.b16 %v187, %v183
    %v232 = vpack.c.b16 %v188, %v184
    %v233 = vpack.c.b16 %v189, %v185
    %v234 = vpack.c.b16 %v190, %v186
    %v235 = vpack.c.b16 %v195, %v191
    %v236 = vpack.c.b16 %v196, %v192
    %v237 = vpack.c.b16 %v197, %v193
    %v238 = vpack.c.b16 %v198, %v194
    %v239 = vpack.c.b16 %v203, %v199
    %v240 = vpack.c.b16 %v204, %v200
    %v241 = vpack.c.b16 %v205, %v201
    %v242 = vpack.c.b16 %v206, %v202
    %v243 = vpack.c.b16 %v211, %v207
    %v244 = vpack.c.b16 %v212, %v208
    %v245 = vpack.c.b16 %v213, %v209
    %v246 = vpack.c.b16 %v214, %v210
    %v325 = vunpack.c.l.b16 %v65
    %v326 = vunpack.c.l.b16 %v66
    %v327 = vunpack.c.l.b16 %v67
    %v328 = vunpack.c.l.b16 %v68
    %v329 = vunpack.c.l.b16 %v69
    %v330 = vunpack.c.l.b16 %v70
    %v331 = vunpack.c.l.b16 %v71
    %v332 = vunpack.c.l.b16 %v72
    %v333 = vunpack.c.l.b16 %v73
    %v334 = vunpack.c.l.b16 %v74
    %v335 = vunpack.c.l.b16 %v75
    %v336 = vunpack.c.l.b16 %v76
    %v337 = vunpack.c.l.b16 %v77
    %v338 = vunpack.c.l.b16 %v78
    %v339 = vunpack.c.l.b16 %v79
    %v340 = vunpack.c.l.b16 %v80
    %v341 = vunpack.c.l.b16 %v81
    %v342 = vunpack.c.l.b16 %v82
    %v343 = vunpack.c.l.b16 %v83
    %v344 = vunpack.c.l.b16 %v84
    %v345 = vunpack.c.l.b16 %v85
    %v346 = vunpack.c.l.b16 %v86
    %v347 = vunpack.c.l.b16 %v87
    %v348 = vunpack.c.l.b16 %v88
    %v349 = vunpack.c.l.b16 %v89
    %v350 = vunpack.c.l.b16 %v90
    %v351 = vunpack.c.l.b16 %v91
    %v352 = vunpack.c.l.b16 %v92
    %v353 = vunpack.c.l.b16 %v93
    %v354 = vunpack.c.l.b16 %v94
    %v355 = vunpack.c.l.b16 %v95
    %v356 = vunpack.c.l.b16 %v96
    %v357 = vunpack.c.l.b16 %v97
    %v358 = vunpack.c.l.b16 %v98
    %v359 = vunpack.c.l.b16 %v99
    %v360 = vunpack.c.l.b16 %v100
    %v361 = vunpack.c.l.b16 %v101
    %v362 = vunpack.c.l.b16 %v102
    %v363 = vunpack.c.l.b16 %v103
    %v364 = vunpack.c.l.b16 %v104
    %v365 = vunpack.c.l.b16 %v105
    %v366 = vunpack.c.l.b16 %v106
    %v367 = vunpack.c.l.b16 %v107
    %v368 = vunpack.c.l.b16 %v108
    %v369 = vunpack.c.l.b16 %v109
    %v370 = vunpack.c.l.b16 %v110
    %v371 = vunpack.c.l.b16 %v111
    %v372 = vunpack.c.l.b16 %v112
    %v373 = vunpack.c.l.b16 %v113
    %v374 = vunpack.c.l.b16 %v114
    %v375 = vunpack.c.l.b16 %v115
    %v376 = vunpack.c.l.b16 %v116
    %v377 = vunpack.c.l.b16 %v117
    %v378 = vunpack.c.l.b16 %v118
    %v379 = vpack.c.b16 %v326, %v325
    %v380 = vpack.c.b16 %v328, %v327
    %v381 = vpack.c.b16 %v330, %v329
    %v382 = vpack.c.b16 %v332, %v331
    %v383 = vpack.c.b16 %v334, %v333
    %v384 = vpack.c.b16 %v336, %v335
    %v385 = vpack.c.b16 %v338, %v337
    %v386 = vpack.c.b16 %v340, %v339
    %v387 = vpack.c.b16 %v342, %v341
    %v388 = vpack.c.b16 %v344, %v343
    %v389 = vpack.c.b16 %v346, %v345
    %v390 = vpack.c.b16 %v348, %v347
    %v391 = vpack.c.b16 %v350, %v349
    %v392 = vpack.c.b16 %v352, %v351
    %v393 = vpack.c.b16 %v354, %v353
    %v394 = vpack.c.b16 %v356, %v355
    %v395 = vpack.c.b16 %v358, %v357
    %v396 = vpack.c.b16 %v360, %v359
    %v397 = vpack.c.b16 %v362, %v361
    %v398 = vpack.c.b16 %v364, %v363
    %v399 = vpack.c.b16 %v366, %v365
    %v400 = vpack.c.b16 %v368, %v367
    %v401 = vpack.c.b16 %v370, %v369
    %v402 = vpack.c.b16 %v372, %v371
    %v403 = vpack.c.b16 %v374, %v373
    %v404 = vpack.c.b16 %v376, %v375
    %v405 = vpack.c.b16 %v378, %v377
    %vm433 = vcmask 392192
    %v435 = vsel %vm433, %v218, 0
    %v438 = vsel %vm433, %v222, 0
    %v441 = vsel %vm433, %v226, 0
    %v444 = vsel %vm433, %v230, 0
    %v447 = vsel %vm433, %v234, 0
    %v450 = vsel %vm433, %v238, 0
    %v453 = vsel %vm433, %v242, 0
    %v456 = vsel %vm433, %v246, 0
    %458 = vmatpush.bf16.msra.mxu0 %v386
    %459 = vmatpush.bf16.msra.mxu0 %v385
    %460 = vmatpush.bf16.msra.mxu0 %v384
    %461 = vmatpush.bf16.msra.mxu0 %v383
    %462 = vmatpush.bf16.msra.mxu0 %v382
    %463 = vmatpush.bf16.msra.mxu0 %v381
    %464 = vmatpush.bf16.msra.mxu0 %v380
    %465 = vmatpush.bf16.msra.mxu0 %v379
    %466 = vmatmul.bf16.gmra.mxu0 %v215
    %v467 = vpop.f32.mrf.mxu0
    %v468 = vadd.f32 0.0, %v467
    %v469 = vpop.f32.mrf.mxu0
    %v470 = vadd.f32 0.0, %v469
    %471 = vmatmul.bf16.gmra.mxu0 %v219
    %v472 = vpop.f32.mrf.mxu0
    %v473 = vadd.f32 0.0, %v472
    %v474 = vpop.f32.mrf.mxu0
    %v475 = vadd.f32 0.0, %v474
    %476 = vmatmul.bf16.gmra.mxu0 %v223
    %v477 = vpop.f32.mrf.mxu0
    %v478 = vadd.f32 0.0, %v477
    %v479 = vpop.f32.mrf.mxu0
    %v480 = vadd.f32 0.0, %v479
    %481 = vmatmul.bf16.gmra.mxu0 %v227
    %v482 = vpop.f32.mrf.mxu0
    %v483 = vadd.f32 0.0, %v482
    %v484 = vpop.f32.mrf.mxu0
    %v485 = vadd.f32 0.0, %v484
    %486 = vmatmul.bf16.gmra.mxu0 %v231
    %v487 = vpop.f32.mrf.mxu0
    %v488 = vadd.f32 0.0, %v487
    %v489 = vpop.f32.mrf.mxu0
    %v490 = vadd.f32 0.0, %v489
    %491 = vmatmul.bf16.gmra.mxu0 %v235
    %v492 = vpop.f32.mrf.mxu0
    %v493 = vadd.f32 0.0, %v492
    %v494 = vpop.f32.mrf.mxu0
    %v495 = vadd.f32 0.0, %v494
    %496 = vmatmul.bf16.gmra.mxu0 %v239
    %v497 = vpop.f32.mrf.mxu0
    %v498 = vadd.f32 0.0, %v497
    %v499 = vpop.f32.mrf.mxu0
    %v500 = vadd.f32 0.0, %v499
    %501 = vmatmul.bf16.gmra.mxu0 %v243
    %v502 = vpop.f32.mrf.mxu0
    %v503 = vadd.f32 0.0, %v502
    %v504 = vpop.f32.mrf.mxu0
    %v505 = vadd.f32 0.0, %v504
    %506 = vdwg.mxu0
    %507 = vmatpush.bf16.msra.mxu0 %v394
    %508 = vmatpush.bf16.msra.mxu0 %v393
    %509 = vmatpush.bf16.msra.mxu0 %v392
    %510 = vmatpush.bf16.msra.mxu0 %v391
    %511 = vmatpush.bf16.msra.mxu0 %v390
    %512 = vmatpush.bf16.msra.mxu0 %v389
    %513 = vmatpush.bf16.msra.mxu0 %v388
    %514 = vmatpush.bf16.msra.mxu0 %v387
    %515 = vmatmul.bf16.gmra.mxu0 %v216
    %v516 = vpop.f32.mrf.mxu0
    %v517 = vadd.f32 %v468, %v516
    %v518 = vpop.f32.mrf.mxu0
    %v519 = vadd.f32 %v470, %v518
    %520 = vmatmul.bf16.gmra.mxu0 %v220
    %v521 = vpop.f32.mrf.mxu0
    %v522 = vadd.f32 %v473, %v521
    %v523 = vpop.f32.mrf.mxu0
    %v524 = vadd.f32 %v475, %v523
    %525 = vmatmul.bf16.gmra.mxu0 %v224
    %v526 = vpop.f32.mrf.mxu0
    %v527 = vadd.f32 %v478, %v526
    %v528 = vpop.f32.mrf.mxu0
    %v529 = vadd.f32 %v480, %v528
    %530 = vmatmul.bf16.gmra.mxu0 %v228
    %v531 = vpop.f32.mrf.mxu0
    %v532 = vadd.f32 %v483, %v531
    %v533 = vpop.f32.mrf.mxu0
    %v534 = vadd.f32 %v485, %v533
    %535 = vmatmul.bf16.gmra.mxu0 %v232
    %v536 = vpop.f32.mrf.mxu0
    %v537 = vadd.f32 %v488, %v536
    %v538 = vpop.f32.mrf.mxu0
    %v539 = vadd.f32 %v490, %v538
    %540 = vmatmul.bf16.gmra.mxu0 %v236
    %v541 = vpop.f32.mrf.mxu0
    %v542 = vadd.f32 %v493, %v541
    %v543 = vpop.f32.mrf.mxu0
    %v544 = vadd.f32 %v495, %v543
    %545 = vmatmul.bf16.gmra.mxu0 %v240
    %v546 = vpop.f32.mrf.mxu0
    %v547 = vadd.f32 %v498, %v546
    %v548 = vpop.f32.mrf.mxu0
    %v549 = vadd.f32 %v500, %v548
    %550 = vmatmul.bf16.gmra.mxu0 %v244
    %v551 = vpop.f32.mrf.mxu0
    %v552 = vadd.f32 %v503, %v551
    %v553 = vpop.f32.mrf.mxu0
    %v554 = vadd.f32 %v505, %v553
    %555 = vdwg.mxu0
    %556 = vmatpush.bf16.msra.mxu0 %v402
    %557 = vmatpush.bf16.msra.mxu0 %v401
    %558 = vmatpush.bf16.msra.mxu0 %v400
    %559 = vmatpush.bf16.msra.mxu0 %v399
    %560 = vmatpush.bf16.msra.mxu0 %v398
    %561 = vmatpush.bf16.msra.mxu0 %v397
    %562 = vmatpush.bf16.msra.mxu0 %v396
    %563 = vmatpush.bf16.msra.mxu0 %v395
    %564 = vmatmul.bf16.gmra.mxu0 %v217
    %v565 = vpop.f32.mrf.mxu0
    %v566 = vadd.f32 %v517, %v565
    %v567 = vpop.f32.mrf.mxu0
    %v568 = vadd.f32 %v519, %v567
    %569 = vmatmul.bf16.gmra.mxu0 %v221
    %v570 = vpop.f32.mrf.mxu0
    %v571 = vadd.f32 %v522, %v570
    %v572 = vpop.f32.mrf.mxu0
    %v573 = vadd.f32 %v524, %v572
    %574 = vmatmul.bf16.gmra.mxu0 %v225
    %v575 = vpop.f32.mrf.mxu0
    %v576 = vadd.f32 %v527, %v575
    %v577 = vpop.f32.mrf.mxu0
    %v578 = vadd.f32 %v529, %v577
    %579 = vmatmul.bf16.gmra.mxu0 %v229
    %v580 = vpop.f32.mrf.mxu0
    %v581 = vadd.f32 %v532, %v580
    %v582 = vpop.f32.mrf.mxu0
    %v583 = vadd.f32 %v534, %v582
    %584 = vmatmul.bf16.gmra.mxu0 %v233
    %v585 = vpop.f32.mrf.mxu0
    %v586 = vadd.f32 %v537, %v585
    %v587 = vpop.f32.mrf.mxu0
    %v588 = vadd.f32 %v539, %v587
    %589 = vmatmul.bf16.gmra.mxu0 %v237
    %v590 = vpop.f32.mrf.mxu0
    %v591 = vadd.f32 %v542, %v590
    %v592 = vpop.f32.mrf.mxu0
    %v593 = vadd.f32 %v544, %v592
    %594 = vmatmul.bf16.gmra.mxu0 %v241
    %v595 = vpop.f32.mrf.mxu0
    %v596 = vadd.f32 %v547, %v595
    %v597 = vpop.f32.mrf.mxu0
    %v598 = vadd.f32 %v549, %v597
    %599 = vmatmul.bf16.gmra.mxu0 %v245
    %v600 = vpop.f32.mrf.mxu0
    %v601 = vadd.f32 %v552, %v600
    %v602 = vpop.f32.mrf.mxu0
    %v603 = vadd.f32 %v554, %v602
    %604 = vdwg.mxu0
    %605 = vmatpush.bf16.msra.mxu0 0
    %606 = vmatpush.bf16.msra.mxu0 0
    %607 = vmatpush.bf16.msra.mxu0 0
    %608 = vmatpush.bf16.msra.mxu0 0
    %609 = vmatpush.bf16.msra.mxu0 0
    %610 = vmatpush.bf16.msra.mxu0 %v405
    %611 = vmatpush.bf16.msra.mxu0 %v404
    %612 = vmatpush.bf16.msra.mxu0 %v403
    %613 = vmatmul.bf16.gmra.mxu0 %v435
    %v614 = vpop.f32.mrf.mxu0
    %v615 = vadd.f32 %v566, %v614
    %v616 = vpop.f32.mrf.mxu0
    %v617 = vadd.f32 %v568, %v616
    %618 = vmatmul.bf16.gmra.mxu0 %v438
    %v619 = vpop.f32.mrf.mxu0
    %v620 = vadd.f32 %v571, %v619
    %v621 = vpop.f32.mrf.mxu0
    %v622 = vadd.f32 %v573, %v621
    %623 = vmatmul.bf16.gmra.mxu0 %v441
    %v624 = vpop.f32.mrf.mxu0
    %v625 = vadd.f32 %v576, %v624
    %v626 = vpop.f32.mrf.mxu0
    %v627 = vadd.f32 %v578, %v626
    %628 = vmatmul.bf16.gmra.mxu0 %v444
    %v629 = vpop.f32.mrf.mxu0
    %v630 = vadd.f32 %v581, %v629
    %v631 = vpop.f32.mrf.mxu0
    %v632 = vadd.f32 %v583, %v631
    %633 = vmatmul.bf16.gmra.mxu0 %v447
    %v634 = vpop.f32.mrf.mxu0
    %v635 = vadd.f32 %v586, %v634
    %v636 = vpop.f32.mrf.mxu0
    %v637 = vadd.f32 %v588, %v636
    %638 = vmatmul.bf16.gmra.mxu0 %v450
    %v639 = vpop.f32.mrf.mxu0
    %v640 = vadd.f32 %v591, %v639
    %v641 = vpop.f32.mrf.mxu0
    %v642 = vadd.f32 %v593, %v641
    %643 = vmatmul.bf16.gmra.mxu0 %v453
    %v644 = vpop.f32.mrf.mxu0
    %v645 = vadd.f32 %v596, %v644
    %v646 = vpop.f32.mrf.mxu0
    %v647 = vadd.f32 %v598, %v646
    %648 = vmatmul.bf16.gmra.mxu0 %v456
    %v649 = vpop.f32.mrf.mxu0
    %v650 = vadd.f32 %v601, %v649
    %v651 = vpop.f32.mrf.mxu0
    %v652 = vadd.f32 %v603, %v651
    %653 = vdwg.mxu0
    %v655 = vperm.slane %v18, 0
    %v657 = vadd.f32 %v615, %v655
    %v658 = vadd.f32 %v617, %v655
    %v659 = vadd.f32 %v620, %v655
    %v660 = vadd.f32 %v622, %v655
    %v661 = vadd.f32 %v625, %v655
    %v662 = vadd.f32 %v627, %v655
    %v663 = vadd.f32 %v630, %v655
    %v664 = vadd.f32 %v632, %v655
    %v665 = vadd.f32 %v635, %v655
    %v666 = vadd.f32 %v637, %v655
    %v667 = vadd.f32 %v640, %v655
    %v668 = vadd.f32 %v642, %v655
    %v669 = vadd.f32 %v645, %v655
    %v670 = vadd.f32 %v647, %v655
    %v671 = vadd.f32 %v650, %v655
    %v672 = vadd.f32 %v652, %v655
    %v673 = vpack.c.bf16 %v657, %v657
    %v674 = vpack.c.bf16 %v658, %v658
    %v675 = vpack.c.bf16 %v659, %v659
    %v676 = vpack.c.bf16 %v660, %v660
    %v677 = vpack.c.bf16 %v661, %v661
    %v678 = vpack.c.bf16 %v662, %v662
    %v679 = vpack.c.bf16 %v663, %v663
    %v680 = vpack.c.bf16 %v664, %v664
    %v681 = vpack.c.bf16 %v665, %v665
    %v682 = vpack.c.bf16 %v666, %v666
    %v683 = vpack.c.bf16 %v667, %v667
    %v684 = vpack.c.bf16 %v668, %v668
    %v685 = vpack.c.bf16 %v669, %v669
    %v686 = vpack.c.bf16 %v670, %v670
    %v687 = vpack.c.bf16 %v671, %v671
    %v688 = vpack.c.bf16 %v672, %v672
    %s689 = smul.addr %s28, 4
    %s690 = scalar_lea.vmem %s3, %s689
    %691 = vst [vmem:[%s690] sm:$0xf] %v673
    %692 = vst [vmem:[%s690 + $0x4] sm:$0xf] %v674
    %693 = vst [vmem:[%s690 + $0x8] sm:$0xf] %v675
    %694 = vst [vmem:[%s690 + $0xc] sm:$0xf] %v676
    %695 = vst [vmem:[%s690 + $0x10] sm:$0xf] %v677
    %696 = vst [vmem:[%s690 + $0x14] sm:$0xf] %v678
    %697 = vst [vmem:[%s690 + $0x18] sm:$0xf] %v679
    %698 = vst [vmem:[%s690 + $0x1c] sm:$0xf] %v680
    %699 = vst [vmem:[%s690 + $0x20] sm:$0xf] %v681
    %700 = vst [vmem:[%s690 + $0x24] sm:$0xf] %v682
    %701 = vst [vmem:[%s690 + $0x28] sm:$0xf] %v683
    %702 = vst [vmem:[%s690 + $0x2c] sm:$0xf] %v684
    %703 = vst [vmem:[%s690 + $0x30] sm:$0xf] %v685
    %704 = vst [vmem:[%s690 + $0x34] sm:$0xf] %v686
    %705 = vst [vmem:[%s690 + $0x38] sm:$0xf] %v687
    %706 = vst [vmem:[%s690 + $0x3c] sm:$0xf] %v688
    %v707 = vadd.f32 %v615, %v617
    %v708 = vadd.f32 %v707, %v620
    %v709 = vadd.f32 %v708, %v622
    %v710 = vadd.f32 %v709, %v625
    %v711 = vadd.f32 %v710, %v627
    %v712 = vadd.f32 %v711, %v630
    %v713 = vadd.f32 %v712, %v632
    %v714 = vadd.f32 %v713, %v635
    %v715 = vadd.f32 %v714, %v637
    %v716 = vadd.f32 %v715, %v640
    %v717 = vadd.f32 %v716, %v642
    %v718 = vadd.f32 %v717, %v645
    %v719 = vadd.f32 %v718, %v647
    %v720 = vadd.f32 %v719, %v650
    %v721 = vadd.f32 %v720, %v652
    %v722 = vrot.slane %v721, 4
    %v723 = vadd.f32 %v721, %v722
    %v724 = vrot.slane %v723, 2
    %v725 = vadd.f32 %v723, %v724
    %v726 = vrot.slane %v725, 1
    %v727 = vadd.f32 %v725, %v726
    %v728 = vadd.f32 %v25, %v727
    %v729 = vmul.f32 %v615, %v615
    %v730 = vmul.f32 %v617, %v617
    %v731 = vmul.f32 %v620, %v620
    %v732 = vmul.f32 %v622, %v622
    %v733 = vmul.f32 %v625, %v625
    %v734 = vmul.f32 %v627, %v627
    %v735 = vmul.f32 %v630, %v630
    %v736 = vmul.f32 %v632, %v632
    %v737 = vmul.f32 %v635, %v635
    %v738 = vmul.f32 %v637, %v637
    %v739 = vmul.f32 %v640, %v640
    %v740 = vmul.f32 %v642, %v642
    %v741 = vmul.f32 %v645, %v645
    %v742 = vmul.f32 %v647, %v647
    %v743 = vmul.f32 %v650, %v650
    %v744 = vmul.f32 %v652, %v652
    %v745 = vadd.f32 %v729, %v730
    %v746 = vadd.f32 %v745, %v731
    %v747 = vadd.f32 %v746, %v732
    %v748 = vadd.f32 %v747, %v733
    %v749 = vadd.f32 %v748, %v734
    %v750 = vadd.f32 %v749, %v735
    %v751 = vadd.f32 %v750, %v736
    %v752 = vadd.f32 %v751, %v737
    %v753 = vadd.f32 %v752, %v738
    %v754 = vadd.f32 %v753, %v739
    %v755 = vadd.f32 %v754, %v740
    %v756 = vadd.f32 %v755, %v741
    %v757 = vadd.f32 %v756, %v742
    %v758 = vadd.f32 %v757, %v743
    %v759 = vadd.f32 %v758, %v744
    %v760 = vrot.slane %v759, 4
    %v761 = vadd.f32 %v759, %v760
    %v762 = vrot.slane %v761, 2
    %v763 = vadd.f32 %v761, %v762
    %v764 = vrot.slane %v763, 1
    %v765 = vadd.f32 %v763, %v764
    %v766 = vadd.f32 %v26, %v765
  $region18: #{conv3d_for_g_forward.2} parent=0 // loop_footer
    %s24 = sadd.s32 1, %s20
  $region19: #{conv3d_for_g_forward.2} parent=0 // loop_footer_branch
    %19 = sbr.rel target = $region15
  $region20: #{conv3d_for_g_forward.2} parent=0 // loop_exit
    _
  %767 = vst [vmem:[%s4] sm:$0x1] %v25
  %768 = vst [vmem:[%s5] sm:$0x1] %v26
  // Predicated region
  $region21: #{conv3d_for_g_forward.2} parent=0 // pred_check
    _
  $region22: #{conv3d_for_g_forward.2} parent=0 // pred_check_branch
    %770 = sbr.rel (0) target = $region24
  $region23: #{conv3d_for_g_forward.2} parent=0 // pred_region
    _
  $region24: #{conv3d_for_g_forward.2} parent=0 // pred_fallthru
    _
  // Predicated region
  $region25: #{conv3d_for_g_forward.2} parent=0 // pred_check
    _
  $region26: #{conv3d_for_g_forward.2} parent=0 // pred_check_branch
    %772 = sbr.rel (0) target = $region28
  $region27: #{conv3d_for_g_forward.2} parent=0 // pred_region
    _
  $region28: #{conv3d_for_g_forward.2} parent=0 // pred_fallthru
    _
  // Predicated region
  $region29: #{conv3d_for_g_forward.2} parent=0 // pred_check
    _
  $region30: #{conv3d_for_g_forward.2} parent=0 // pred_check_branch
    %774 = sbr.rel (0) target = $region32
  $region31: #{conv3d_for_g_forward.2} parent=0 // pred_region
    _
  $region32: #{conv3d_for_g_forward.2} parent=0 // pred_fallthru
    _
  // Predicated region
  $region33: #{conv3d_for_g_forward.2} parent=0 // pred_check
    _
  $region34: #{conv3d_for_g_forward.2} parent=0 // pred_check_branch
    %776 = sbr.rel (0) target = $region36
  $region35: #{conv3d_for_g_forward.2} parent=0 // pred_region
    _
  $region36: #{conv3d_for_g_forward.2} parent=0 // pred_fallthru
    _
  // Predicated region
  $region37: #{conv3d_for_g_forward.2} parent=0 // pred_check
    _
  $region38: #{conv3d_for_g_forward.2} parent=0 // pred_check_branch
    %778 = sbr.rel (0) target = $region40
  $region39: #{conv3d_for_g_forward.2} parent=0 // pred_region
    _
  $region40: #{conv3d_for_g_forward.2} parent=0 // pred_fallthru
    _
  // Predicated region
  $region41: #{conv3d_for_g_forward.2} parent=0 // pred_check
    _
  $region42: #{conv3d_for_g_forward.2} parent=0 // pred_check_branch
    %780 = sbr.rel (0) target = $region44
  $region43: #{conv3d_for_g_forward.2} parent=0 // pred_region
    _
  $region44: #{conv3d_for_g_forward.2} parent=0 // pred_fallthru
    _

// kernel: conv3d_for_g_forward.3
$region0: #{conv3d_for_g_forward.3}
  #allocation0 [shape = 'u32[]', space=smem, size = 0x4, offset = 0x4, fixed_abs, tag = 'smem constant byte address 0x4 - core index']
  #allocation1 [shape = 'u32[72,128]{1,0:T(1,128)}', space=vmem, size = 0x9000, scoped, tag = 'internal scratch']
  #allocation2 [shape = 'f32[1,128]{1,0:T(1,128)}', space=vmem, size = 0x200, scoped, tag = 'scratch operand']
  %s0 = inlined_call_operand.vmem [shape: bf16[2,1024,128], index: 0, kind: input, shape index: {}]
  %s1 = inlined_call_operand.vmem [shape: f32[1,1,128], index: 1, kind: input, shape index: {}]
  %s2 = inlined_call_operand.vmem [shape: f32[1,1,128], index: 2, kind: input, shape index: {}]
  %s3 = inlined_call_operand.vmem [shape: f32[128,128], index: 3, kind: input, shape index: {}]
  %s4 = inlined_call_operand.vmem [shape: f32[1,128], index: 4, kind: input, shape index: {}]
  %s5 = inlined_call_operand.vmem [shape: f32[128,128], index: 5, kind: input, shape index: {}]
  %s6 = inlined_call_operand.vmem [shape: f32[1,128], index: 6, kind: input, shape index: {}]
  %s7 = inlined_call_operand.vmem [shape: bf16[2,1024,128], index: 7, kind: output, shape index: {}]
  %s8 = sld [smem:[#allocation0]]
  $region76: #{conv3d_for_g_forward.3} parent=0
    _
  %s10 = ssub.s32 1, %s8
  %s11 = scalar_select 0, %s10, %s8
  loop: start=0, step=1, limit=6
  $region2: #{conv3d_for_g_forward.3} parent=0 // loop_pre_header
    _
  $region3: #{conv3d_for_g_forward.3} parent=0 // loop_header
    %s13 = sphi 0, %s17
    %p14 = scmp.ge.s32.totalorder %s13, 6
    %s20 = sphi 0, %s32
    %s21 = sphi 0, %s28
    %s22 = sphi 0, %s20
    %s23 = sphi 0, %s21
    %s24 = sphi 0, %s22
    %s25 = sphi 0, %s23
    %s37 = sphi 0, %s39
    %s40 = sphi 0, %s37
    %s41 = sphi 0, %s40
    %s57 = sphi 0, %s41
    %s61 = sphi 0, %s61
    %s63 = sphi 0, %s61
    %s64 = sphi 0, %s63
    %s78 = sphi 0, %s64
    %s82 = sphi 0, %s82
    %s84 = sphi 0, %s82
    %s85 = sphi 0, %s84
    %s99 = sphi 0, %s85
    %s103 = sphi 0, %s103
    %s105 = sphi 0, %s103
    %s106 = sphi 0, %s105
    %s120 = sphi 0, %s106
    %s124 = sphi 0, %s124
    %s126 = sphi 0, %s124
    %s127 = sphi 0, %s126
    %s141 = sphi 0, %s127
    %s145 = sphi 0, %s145
    %s147 = sphi 0, %s145
    %s148 = sphi 0, %s147
    %s162 = sphi 0, %s148
    %s166 = sphi 0, %s166
    %s168 = sphi 0, %s166
    %s169 = sphi 0, %s168
    %s183 = sphi 0, %s169
    %s189 = sphi 0, %s191
    %s192 = sphi 0, %s189
    %s193 = sphi 0, %s192
    %s209 = sphi 0, %s193
  $region4: #{conv3d_for_g_forward.3} parent=0 // loop_header_branch
    %16 = sbr.rel (%p14) target = $region8
  $region5: #{conv3d_for_g_forward.3} parent=0 // loop_body
    %s18 = ssub.s32 %s13, 1
    %s19 = ssub.s32 %s13, 2
    %s26 = sadd.s32 1, %s21
    %p27 = scmp.ge.s32.totalorder %s26, 2
    %s28 = scalar_select %p27, 0, %s26
    %s29 = sadd.s32 1, %s20
    %s30 = scalar_select %p27, %s29, %s20
    %p31 = scmp.ge.s32.totalorder %s30, 2
    %s32 = scalar_select %p31, 0, %s30
    %s33 = ssub.s32 %s20, %s32
    %s34 = ssub.s32 %s21, %s28
    %s35 = sor.u32 %s33, %s34
    %p36 = scmp.eq.s32.totalorder %s35, 0
    %s38 = sadd.s32 %s37, 1
    %s39 = scalar_select %p36, %s37, %s38
    %p42 = pneg %p36
    %p43 = scmp.eq.s32.totalorder %s13, 3
    %p44 = por %p42, %p43
    %p45 = scmp.ne.s32.totalorder %s37, %s40
    %p46 = scmp.eq.s32.totalorder %s13, 0
    %p47 = por %p45, %p46
    %p48 = scmp.ne.s32.totalorder %s37, %s40
    %p49 = scmp.eq.s32.totalorder %s18, 3
    %p50 = por %p48, %p49
    %p51 = scmp.ne.s32.totalorder %s40, %s41
    %p52 = scmp.eq.s32.totalorder %s18, 0
    %p53 = por %p51, %p52
    %p54 = scmp.ne.s32.totalorder %s40, %s41
    %p55 = scmp.eq.s32.totalorder %s19, 3
    %p56 = por %p54, %p55
    %p58 = scmp.ne.s32.totalorder %s41, %s57
    %p59 = scmp.eq.s32.totalorder %s19, 0
    %p60 = por %p58, %p59
    %s62 = sadd.s32 %s61, 1
    %p65 = scmp.eq.s32.totalorder %s13, 3
    %p66 = scmp.ne.s32.totalorder %s61, %s63
    %p67 = scmp.eq.s32.totalorder %s13, 0
    %p68 = por %p66, %p67
    %p69 = scmp.ne.s32.totalorder %s61, %s63
    %p70 = scmp.eq.s32.totalorder %s18, 3
    %p71 = por %p69, %p70
    %p72 = scmp.ne.s32.totalorder %s63, %s64
    %p73 = scmp.eq.s32.totalorder %s18, 0
    %p74 = por %p72, %p73
    %p75 = scmp.ne.s32.totalorder %s63, %s64
    %p76 = scmp.eq.s32.totalorder %s19, 3
    %p77 = por %p75, %p76
    %p79 = scmp.ne.s32.totalorder %s64, %s78
    %p80 = scmp.eq.s32.totalorder %s19, 0
    %p81 = por %p79, %p80
    %s83 = sadd.s32 %s82, 1
    %p86 = scmp.eq.s32.totalorder %s13, 3
    %p87 = scmp.ne.s32.totalorder %s82, %s84
    %p88 = scmp.eq.s32.totalorder %s13, 0
    %p89 = por %p87, %p88
    %p90 = scmp.ne.s32.totalorder %s82, %s84
    %p91 = scmp.eq.s32.totalorder %s18, 3
    %p92 = por %p90, %p91
    %p93 = scmp.ne.s32.totalorder %s84, %s85
    %p94 = scmp.eq.s32.totalorder %s18, 0
    %p95 = por %p93, %p94
    %p96 = scmp.ne.s32.totalorder %s84, %s85
    %p97 = scmp.eq.s32.totalorder %s19, 3
    %p98 = por %p96, %p97
    %p100 = scmp.ne.s32.totalorder %s85, %s99
    %p101 = scmp.eq.s32.totalorder %s19, 0
    %p102 = por %p100, %p101
    %s104 = sadd.s32 %s103, 1
    %p107 = scmp.eq.s32.totalorder %s13, 3
    %p108 = scmp.ne.s32.totalorder %s103, %s105
    %p109 = scmp.eq.s32.totalorder %s13, 0
    %p110 = por %p108, %p109
    %p111 = scmp.ne.s32.totalorder %s103, %s105
    %p112 = scmp.eq.s32.totalorder %s18, 3
    %p113 = por %p111, %p112
    %p114 = scmp.ne.s32.totalorder %s105, %s106
    %p115 = scmp.eq.s32.totalorder %s18, 0
    %p116 = por %p114, %p115
    %p117 = scmp.ne.s32.totalorder %s105, %s106
    %p118 = scmp.eq.s32.totalorder %s19, 3
    %p119 = por %p117, %p118
    %p121 = scmp.ne.s32.totalorder %s106, %s120
    %p122 = scmp.eq.s32.totalorder %s19, 0
    %p123 = por %p121, %p122
    %s125 = sadd.s32 %s124, 1
    %p128 = scmp.eq.s32.totalorder %s13, 3
    %p129 = scmp.ne.s32.totalorder %s124, %s126
    %p130 = scmp.eq.s32.totalorder %s13, 0
    %p131 = por %p129, %p130
    %p132 = scmp.ne.s32.totalorder %s124, %s126
    %p133 = scmp.eq.s32.totalorder %s18, 3
    %p134 = por %p132, %p133
    %p135 = scmp.ne.s32.totalorder %s126, %s127
    %p136 = scmp.eq.s32.totalorder %s18, 0
    %p137 = por %p135, %p136
    %p138 = scmp.ne.s32.totalorder %s126, %s127
    %p139 = scmp.eq.s32.totalorder %s19, 3
    %p140 = por %p138, %p139
    %p142 = scmp.ne.s32.totalorder %s127, %s141
    %p143 = scmp.eq.s32.totalorder %s19, 0
    %p144 = por %p142, %p143
    %s146 = sadd.s32 %s145, 1
    %p149 = scmp.eq.s32.totalorder %s13, 3
    %p150 = scmp.ne.s32.totalorder %s145, %s147
    %p151 = scmp.eq.s32.totalorder %s13, 0
    %p152 = por %p150, %p151
    %p153 = scmp.ne.s32.totalorder %s145, %s147
    %p154 = scmp.eq.s32.totalorder %s18, 3
    %p155 = por %p153, %p154
    %p156 = scmp.ne.s32.totalorder %s147, %s148
    %p157 = scmp.eq.s32.totalorder %s18, 0
    %p158 = por %p156, %p157
    %p159 = scmp.ne.s32.totalorder %s147, %s148
    %p160 = scmp.eq.s32.totalorder %s19, 3
    %p161 = por %p159, %p160
    %p163 = scmp.ne.s32.totalorder %s148, %s162
    %p164 = scmp.eq.s32.totalorder %s19, 0
    %p165 = por %p163, %p164
    %s167 = sadd.s32 %s166, 1
    %p170 = scmp.eq.s32.totalorder %s13, 3
    %p171 = scmp.ne.s32.totalorder %s166, %s168
    %p172 = scmp.eq.s32.totalorder %s13, 0
    %p173 = por %p171, %p172
    %p174 = scmp.ne.s32.totalorder %s166, %s168
    %p175 = scmp.eq.s32.totalorder %s18, 3
    %p176 = por %p174, %p175
    %p177 = scmp.ne.s32.totalorder %s168, %s169
    %p178 = scmp.eq.s32.totalorder %s18, 0
    %p179 = por %p177, %p178
    %p180 = scmp.ne.s32.totalorder %s168, %s169
    %p181 = scmp.eq.s32.totalorder %s19, 3
    %p182 = por %p180, %p181
    %p184 = scmp.ne.s32.totalorder %s169, %s183
    %p185 = scmp.eq.s32.totalorder %s19, 0
    %p186 = por %p184, %p185
    %s187 = ssub.s32 %s20, %s32
    %p188 = scmp.eq.s32.totalorder %s187, 0
    %s190 = sadd.s32 %s189, 1
    %s191 = scalar_select %p188, %s189, %s190
    %p194 = pneg %p188
    %p195 = scmp.eq.s32.totalorder %s13, 3
    %p196 = por %p194, %p195
    %p197 = scmp.ne.s32.totalorder %s189, %s192
    %p198 = scmp.eq.s32.totalorder %s13, 0
    %p199 = por %p197, %p198
    %p200 = scmp.ne.s32.totalorder %s189, %s192
    %p201 = scmp.eq.s32.totalorder %s18, 3
    %p202 = por %p200, %p201
    %p203 = scmp.ne.s32.totalorder %s192, %s193
    %p204 = scmp.eq.s32.totalorder %s18, 0
    %p205 = por %p203, %p204
    %p206 = scmp.ne.s32.totalorder %s192, %s193
    %p207 = scmp.eq.s32.totalorder %s19, 3
    %p208 = por %p206, %p207
    %p210 = scmp.ne.s32.totalorder %s193, %s209
    %p211 = scmp.eq.s32.totalorder %s19, 0
    %p212 = por %p210, %p211
    %p213 = scmp.le.s32.totalorder 1, %s13
    %p214 = scmp.lt.s32.totalorder %s13, 5
    %p215 = pnand %p213, %p214
    %p216 = pneg %p215
    // Predicated region
    $region9: #{conv3d_for_g_forward.3} parent=5 // pred_check
      _
    $region10: #{conv3d_for_g_forward.3} parent=5 // pred_check_branch
      %218 = sbr.rel (%p215) target = $region12
    $region11: #{conv3d_for_g_forward.3} parent=5 // pred_region
      %s219 = ssub.s32 %s13, 1
      // Predicated region
      $region13: #{conv3d_for_g_forward.3} parent=11 // pred_check
        %p220 = pneg %p74
      $region14: #{conv3d_for_g_forward.3} parent=11 // pred_check_branch
        %222 = sbr.rel (%p220) target = $region16
      $region15: #{conv3d_for_g_forward.3} parent=11 // pred_region
        _
      $region16: #{conv3d_for_g_forward.3} parent=11 // pred_fallthru
        _
      // Predicated region
      $region17: #{conv3d_for_g_forward.3} parent=11 // pred_check
        %p223 = pneg %p95
      $region18: #{conv3d_for_g_forward.3} parent=11 // pred_check_branch
        %225 = sbr.rel (%p223) target = $region20
      $region19: #{conv3d_for_g_forward.3} parent=11 // pred_region
        _
      $region20: #{conv3d_for_g_forward.3} parent=11 // pred_fallthru
        _
      // Predicated region
      $region21: #{conv3d_for_g_forward.3} parent=11 // pred_check
        %p226 = pneg %p116
      $region22: #{conv3d_for_g_forward.3} parent=11 // pred_check_branch
        %228 = sbr.rel (%p226) target = $region24
      $region23: #{conv3d_for_g_forward.3} parent=11 // pred_region
        _
      $region24: #{conv3d_for_g_forward.3} parent=11 // pred_fallthru
        _
      // Predicated region
      $region25: #{conv3d_for_g_forward.3} parent=11 // pred_check
        %p229 = pneg %p137
      $region26: #{conv3d_for_g_forward.3} parent=11 // pred_check_branch
        %231 = sbr.rel (%p229) target = $region28
      $region27: #{conv3d_for_g_forward.3} parent=11 // pred_region
        _
      $region28: #{conv3d_for_g_forward.3} parent=11 // pred_fallthru
        _
      // Predicated region
      $region29: #{conv3d_for_g_forward.3} parent=11 // pred_check
        %p232 = pneg %p158
      $region30: #{conv3d_for_g_forward.3} parent=11 // pred_check_branch
        %234 = sbr.rel (%p232) target = $region32
      $region31: #{conv3d_for_g_forward.3} parent=11 // pred_region
        _
      $region32: #{conv3d_for_g_forward.3} parent=11 // pred_fallthru
        _
      // Predicated region
      $region33: #{conv3d_for_g_forward.3} parent=11 // pred_check
        %p235 = pneg %p179
      $region34: #{conv3d_for_g_forward.3} parent=11 // pred_check_branch
        %237 = sbr.rel (%p235) target = $region36
      $region35: #{conv3d_for_g_forward.3} parent=11 // pred_region
        _
      $region36: #{conv3d_for_g_forward.3} parent=11 // pred_fallthru
        _
    $region12: #{conv3d_for_g_forward.3} parent=5 // pred_fallthru
      _
    %p238 = scmp.lt.s32.totalorder %s13, 4
    // Predicated region
    $region37: #{conv3d_for_g_forward.3} parent=5 // pred_check
      %p239 = pneg %p238
    $region38: #{conv3d_for_g_forward.3} parent=5 // pred_check_branch
      %241 = sbr.rel (%p239) target = $region40
    $region39: #{conv3d_for_g_forward.3} parent=5 // pred_region
      // Predicated region
      $region41: #{conv3d_for_g_forward.3} parent=39 // pred_check
        %p242 = pneg %p47
      $region42: #{conv3d_for_g_forward.3} parent=39 // pred_check_branch
        %244 = sbr.rel (%p242) target = $region44
      $region43: #{conv3d_for_g_forward.3} parent=39 // pred_region
        %s245 = smul.u32 64, %s21
        %p246 = scmp.lt.s32.totalorder %s20, 1
        %s247 = scalar_select %p246, %s20, 1
        %p248 = scmp.lt.s32.totalorder %s245, 127
        %s249 = scalar_select %p248, %s245, 127
        %s250 = smul.addr %s247, 128
        %s251 = sadd.s32 %s249, %s250
        %s252 = smul.addr %s251, 4
        %s253 = scalar_lea.vmem %s0, %s252
        %s254 = smul.u32 64, %s21
      $region44: #{conv3d_for_g_forward.3} parent=39 // pred_fallthru
        _
    $region40: #{conv3d_for_g_forward.3} parent=5 // pred_fallthru
      _
    %p255 = scmp.le.s32.totalorder 1, %s13
    %p256 = scmp.lt.s32.totalorder %s13, 5
    %p257 = pnand %p255, %p256
    %p258 = pneg %p257
    // Predicated region
    $region45: #{conv3d_for_g_forward.3} parent=5 // pred_check
      _
    $region46: #{conv3d_for_g_forward.3} parent=5 // pred_check_branch
      %260 = sbr.rel (%p257) target = $region48
    $region47: #{conv3d_for_g_forward.3} parent=5 // pred_region
      %s261 = ssub.s32 %s13, 1
      %s262 = smul.u32 64, %s23
      %p263 = scmp.lt.s32.totalorder %s22, 1
      %s264 = scalar_select %p263, %s22, 1
      %p265 = scmp.lt.s32.totalorder %s262, 127
      %s266 = scalar_select %p265, %s262, 127
      %s267 = smul.addr %s264, 128
      %s268 = sadd.s32 %s266, %s267
      %s269 = smul.addr %s268, 4
      %s270 = scalar_lea.vmem %s0, %s269
      %p271 = pneg %p53
      %p272 = pneg %p50
      %p273 = pneg %p74
      %p274 = pneg %p71
      %p275 = pneg %p95
      %p276 = pneg %p92
      %p277 = pneg %p116
      %p278 = pneg %p113
      %p279 = pneg %p137
      %p280 = pneg %p134
      %p281 = pneg %p158
      %p282 = pneg %p155
      %p283 = pneg %p179
      %p284 = pneg %p176
      %p285 = pneg %p205
      %p286 = pneg %p202
      %p287 = scmp.lt.s32.totalorder %s22, 1
      %s288 = scalar_select %p287, %s22, 1
      %s289 = smul.addr %s288, 128
      %s290 = smul.addr %s289, 4
      %s291 = scalar_lea.vmem %s7, %s290
      %s292 = smul.u32 64, %s23
      %p293 = scmp.lt.s32.totalorder %s22, 1
      %s294 = scalar_select %p293, %s22, 1
      %p295 = scmp.lt.s32.totalorder %s292, 127
      %s296 = scalar_select %p295, %s292, 127
      %s297 = smul.addr %s294, 128
      %s298 = sadd.s32 %s296, %s297
      %s299 = smul.addr %s298, 4
      %s300 = scalar_lea.vmem %s0, %s299
      %s301 = smul.u32 64, %s23
      %p302 = scmp.lt.s32.totalorder %s22, 1
      %s303 = scalar_select %p302, %s22, 1
      %s304 = smul.addr %s303, 128
      %s305 = smul.addr %s304, 4
      %s306 = scalar_lea.vmem %s7, %s305
      %p307 = scmp.eq.s32.totalorder %s23, 0
      // Predicated region
      $region49: #{conv3d_for_g_forward.3} parent=47 // pred_check
        %p308 = pneg %p307
      $region50: #{conv3d_for_g_forward.3} parent=47 // pred_check_branch
        %310 = sbr.rel (%p308) target = $region52
      $region51: #{conv3d_for_g_forward.3} parent=47 // pred_region
        %311 = vst [vmem:[#allocation2] sm:$0x1] 0.0
      $region52: #{conv3d_for_g_forward.3} parent=47 // pred_fallthru
        _
      %s312 = smul.u32 %s23, 512
      %v313 = vld [vmem:[%s300] sm:$0xf]
      %v314 = vld [vmem:[%s300 + $0x4] sm:$0xf]
      %v315 = vld [vmem:[%s300 + $0x8] sm:$0xf]
      %v316 = vld [vmem:[%s300 + $0xc] sm:$0xf]
      %v317 = vld [vmem:[%s300 + $0x10] sm:$0xf]
      %v318 = vld [vmem:[%s300 + $0x14] sm:$0xf]
      %v319 = vld [vmem:[%s300 + $0x18] sm:$0xf]
      %v320 = vld [vmem:[%s300 + $0x1c] sm:$0xf]
      %v321 = vld [vmem:[%s300 + $0x20] sm:$0xf]
      %v322 = vld [vmem:[%s300 + $0x24] sm:$0xf]
      %v323 = vld [vmem:[%s300 + $0x28] sm:$0xf]
      %v324 = vld [vmem:[%s300 + $0x2c] sm:$0xf]
      %v325 = vld [vmem:[%s300 + $0x30] sm:$0xf]
      %v326 = vld [vmem:[%s300 + $0x34] sm:$0xf]
      %v327 = vld [vmem:[%s300 + $0x38] sm:$0xf]
      %v328 = vld [vmem:[%s300 + $0x3c] sm:$0xf]
      %v329 = vld [vmem:[%s300 + $0x40] sm:$0xf]
      %v330 = vld [vmem:[%s300 + $0x44] sm:$0xf]
      %v331 = vld [vmem:[%s300 + $0x48] sm:$0xf]
      %v332 = vld [vmem:[%s300 + $0x4c] sm:$0xf]
      %v333 = vld [vmem:[%s300 + $0x50] sm:$0xf]
      %v334 = vld [vmem:[%s300 + $0x54] sm:$0xf]
      %v335 = vld [vmem:[%s300 + $0x58] sm:$0xf]
      %v336 = vld [vmem:[%s300 + $0x5c] sm:$0xf]
      %v337 = vld [vmem:[%s300 + $0x60] sm:$0xf]
      %v338 = vld [vmem:[%s300 + $0x64] sm:$0xf]
      %v339 = vld [vmem:[%s300 + $0x68] sm:$0xf]
      %v340 = vld [vmem:[%s300 + $0x6c] sm:$0xf]
      %v341 = vld [vmem:[%s300 + $0x70] sm:$0xf]
      %v342 = vld [vmem:[%s300 + $0x74] sm:$0xf]
      %v343 = vld [vmem:[%s300 + $0x78] sm:$0xf]
      %v344 = vld [vmem:[%s300 + $0x7c] sm:$0xf]
      %v345 = vld [vmem:[%s300 + $0x80] sm:$0xf]
      %v346 = vld [vmem:[%s300 + $0x84] sm:$0xf]
      %v347 = vld [vmem:[%s300 + $0x88] sm:$0xf]
      %v348 = vld [vmem:[%s300 + $0x8c] sm:$0xf]
      %v349 = vld [vmem:[%s300 + $0x90] sm:$0xf]
      %v350 = vld [vmem:[%s300 + $0x94] sm:$0xf]
      %v351 = vld [vmem:[%s300 + $0x98] sm:$0xf]
      %v352 = vld [vmem:[%s300 + $0x9c] sm:$0xf]
      %v353 = vld [vmem:[%s300 + $0xa0] sm:$0xf]
      %v354 = vld [vmem:[%s300 + $0xa4] sm:$0xf]
      %v355 = vld [vmem:[%s300 + $0xa8] sm:$0xf]
      %v356 = vld [vmem:[%s300 + $0xac] sm:$0xf]
      %v357 = vld [vmem:[%s300 + $0xb0] sm:$0xf]
      %v358 = vld [vmem:[%s300 + $0xb4] sm:$0xf]
      %v359 = vld [vmem:[%s300 + $0xb8] sm:$0xf]
      %v360 = vld [vmem:[%s300 + $0xbc] sm:$0xf]
      %v361 = vld [vmem:[%s300 + $0xc0] sm:$0xf]
      %v362 = vld [vmem:[%s300 + $0xc4] sm:$0xf]
      %v363 = vld [vmem:[%s300 + $0xc8] sm:$0xf]
      %v364 = vld [vmem:[%s300 + $0xcc] sm:$0xf]
      %v365 = vld [vmem:[%s300 + $0xd0] sm:$0xf]
      %v366 = vld [vmem:[%s300 + $0xd4] sm:$0xf]
      %v367 = vld [vmem:[%s300 + $0xd8] sm:$0xf]
      %v368 = vld [vmem:[%s300 + $0xdc] sm:$0xf]
      %v369 = vld [vmem:[%s300 + $0xe0] sm:$0xf]
      %v370 = vld [vmem:[%s300 + $0xe4] sm:$0xf]
      %v371 = vld [vmem:[%s300 + $0xe8] sm:$0xf]
      %v372 = vld [vmem:[%s300 + $0xec] sm:$0xf]
      %v373 = vld [vmem:[%s300 + $0xf0] sm:$0xf]
      %v374 = vld [vmem:[%s300 + $0xf4] sm:$0xf]
      %v375 = vld [vmem:[%s300 + $0xf8] sm:$0xf]
      %v376 = vld [vmem:[%s300 + $0xfc] sm:$0xf]
      %v377 = vunpack.c.l.bf16 %v313
      %v378 = vunpack.c.l.bf16 %v314
      %v379 = vunpack.c.l.bf16 %v315
      %v380 = vunpack.c.l.bf16 %v316
      %v381 = vunpack.c.l.bf16 %v317
      %v382 = vunpack.c.l.bf16 %v318
      %v383 = vunpack.c.l.bf16 %v319
      %v384 = vunpack.c.l.bf16 %v320
      %v385 = vunpack.c.l.bf16 %v321
      %v386 = vunpack.c.l.bf16 %v322
      %v387 = vunpack.c.l.bf16 %v323
      %v388 = vunpack.c.l.bf16 %v324
      %v389 = vunpack.c.l.bf16 %v325
      %v390 = vunpack.c.l.bf16 %v326
      %v391 = vunpack.c.l.bf16 %v327
      %v392 = vunpack.c.l.bf16 %v328
      %v393 = vunpack.c.l.bf16 %v329
      %v394 = vunpack.c.l.bf16 %v330
      %v395 = vunpack.c.l.bf16 %v331
      %v396 = vunpack.c.l.bf16 %v332
      %v397 = vunpack.c.l.bf16 %v333
      %v398 = vunpack.c.l.bf16 %v334
      %v399 = vunpack.c.l.bf16 %v335
      %v400 = vunpack.c.l.bf16 %v336
      %v401 = vunpack.c.l.bf16 %v337
      %v402 = vunpack.c.l.bf16 %v338
      %v403 = vunpack.c.l.bf16 %v339
      %v404 = vunpack.c.l.bf16 %v340
      %v405 = vunpack.c.l.bf16 %v341
      %v406 = vunpack.c.l.bf16 %v342
      %v407 = vunpack.c.l.bf16 %v343
      %v408 = vunpack.c.l.bf16 %v344
      %v409 = vunpack.c.l.bf16 %v345
      %v410 = vunpack.c.l.bf16 %v346
      %v411 = vunpack.c.l.bf16 %v347
      %v412 = vunpack.c.l.bf16 %v348
      %v413 = vunpack.c.l.bf16 %v349
      %v414 = vunpack.c.l.bf16 %v350
      %v415 = vunpack.c.l.bf16 %v351
      %v416 = vunpack.c.l.bf16 %v352
      %v417 = vunpack.c.l.bf16 %v353
      %v418 = vunpack.c.l.bf16 %v354
      %v419 = vunpack.c.l.bf16 %v355
      %v420 = vunpack.c.l.bf16 %v356
      %v421 = vunpack.c.l.bf16 %v357
      %v422 = vunpack.c.l.bf16 %v358
      %v423 = vunpack.c.l.bf16 %v359
      %v424 = vunpack.c.l.bf16 %v360
      %v425 = vunpack.c.l.bf16 %v361
      %v426 = vunpack.c.l.bf16 %v362
      %v427 = vunpack.c.l.bf16 %v363
      %v428 = vunpack.c.l.bf16 %v364
      %v429 = vunpack.c.l.bf16 %v365
      %v430 = vunpack.c.l.bf16 %v366
      %v431 = vunpack.c.l.bf16 %v367
      %v432 = vunpack.c.l.bf16 %v368
      %v433 = vunpack.c.l.bf16 %v369
      %v434 = vunpack.c.l.bf16 %v370
      %v435 = vunpack.c.l.bf16 %v371
      %v436 = vunpack.c.l.bf16 %v372
      %v437 = vunpack.c.l.bf16 %v373
      %v438 = vunpack.c.l.bf16 %v374
      %v439 = vunpack.c.l.bf16 %v375
      %v440 = vunpack.c.l.bf16 %v376
      %v441 = vld [vmem:[%s1] sm:$0x1]
      %v443 = vperm.slane %v441, 0
      %v445 = vmul.f32 %v377, %v443
      %v446 = vmul.f32 %v378, %v443
      %v447 = vmul.f32 %v379, %v443
      %v448 = vmul.f32 %v380, %v443
      %v449 = vmul.f32 %v381, %v443
      %v450 = vmul.f32 %v382, %v443
      %v451 = vmul.f32 %v383, %v443
      %v452 = vmul.f32 %v384, %v443
      %v453 = vmul.f32 %v385, %v443
      %v454 = vmul.f32 %v386, %v443
      %v455 = vmul.f32 %v387, %v443
      %v456 = vmul.f32 %v388, %v443
      %v457 = vmul.f32 %v389, %v443
      %v458 = vmul.f32 %v390, %v443
      %v459 = vmul.f32 %v391, %v443
      %v460 = vmul.f32 %v392, %v443
      %v461 = vmul.f32 %v393, %v443
      %v462 = vmul.f32 %v394, %v443
      %v463 = vmul.f32 %v395, %v443
      %v464 = vmul.f32 %v396, %v443
      %v465 = vmul.f32 %v397, %v443
      %v466 = vmul.f32 %v398, %v443
      %v467 = vmul.f32 %v399, %v443
      %v468 = vmul.f32 %v400, %v443
      %v469 = vmul.f32 %v401, %v443
      %v470 = vmul.f32 %v402, %v443
      %v471 = vmul.f32 %v403, %v443
      %v472 = vmul.f32 %v404, %v443
      %v473 = vmul.f32 %v405, %v443
      %v474 = vmul.f32 %v406, %v443
      %v475 = vmul.f32 %v407, %v443
      %v476 = vmul.f32 %v408, %v443
      %v477 = vmul.f32 %v409, %v443
      %v478 = vmul.f32 %v410, %v443
      %v479 = vmul.f32 %v411, %v443
      %v480 = vmul.f32 %v412, %v443
      %v481 = vmul.f32 %v413, %v443
      %v482 = vmul.f32 %v414, %v443
      %v483 = vmul.f32 %v415, %v443
      %v484 = vmul.f32 %v416, %v443
      %v485 = vmul.f32 %v417, %v443
      %v486 = vmul.f32 %v418, %v443
      %v487 = vmul.f32 %v419, %v443
      %v488 = vmul.f32 %v420, %v443
      %v489 = vmul.f32 %v421, %v443
      %v490 = vmul.f32 %v422, %v443
      %v491 = vmul.f32 %v423, %v443
      %v492 = vmul.f32 %v424, %v443
      %v493 = vmul.f32 %v425, %v443
      %v494 = vmul.f32 %v426, %v443
      %v495 = vmul.f32 %v427, %v443
      %v496 = vmul.f32 %v428, %v443
      %v497 = vmul.f32 %v429, %v443
      %v498 = vmul.f32 %v430, %v443
      %v499 = vmul.f32 %v431, %v443
      %v500 = vmul.f32 %v432, %v443
      %v501 = vmul.f32 %v433, %v443
      %v502 = vmul.f32 %v434, %v443
      %v503 = vmul.f32 %v435, %v443
      %v504 = vmul.f32 %v436, %v443
      %v505 = vmul.f32 %v437, %v443
      %v506 = vmul.f32 %v438, %v443
      %v507 = vmul.f32 %v439, %v443
      %v508 = vmul.f32 %v440, %v443
      %v509 = vld [vmem:[%s2] sm:$0x1]
      %v511 = vperm.slane %v509, 0
      %v513 = vadd.f32 %v445, %v511
      %v514 = vadd.f32 %v446, %v511
      %v515 = vadd.f32 %v447, %v511
      %v516 = vadd.f32 %v448, %v511
      %v517 = vadd.f32 %v449, %v511
      %v518 = vadd.f32 %v450, %v511
      %v519 = vadd.f32 %v451, %v511
      %v520 = vadd.f32 %v452, %v511
      %v521 = vadd.f32 %v453, %v511
      %v522 = vadd.f32 %v454, %v511
      %v523 = vadd.f32 %v455, %v511
      %v524 = vadd.f32 %v456, %v511
      %v525 = vadd.f32 %v457, %v511
      %v526 = vadd.f32 %v458, %v511
      %v527 = vadd.f32 %v459, %v511
      %v528 = vadd.f32 %v460, %v511
      %v529 = vadd.f32 %v461, %v511
      %v530 = vadd.f32 %v462, %v511
      %v531 = vadd.f32 %v463, %v511
      %v532 = vadd.f32 %v464, %v511
      %v533 = vadd.f32 %v465, %v511
      %v534 = vadd.f32 %v466, %v511
      %v535 = vadd.f32 %v467, %v511
      %v536 = vadd.f32 %v468, %v511
      %v537 = vadd.f32 %v469, %v511
      %v538 = vadd.f32 %v470, %v511
      %v539 = vadd.f32 %v471, %v511
      %v540 = vadd.f32 %v472, %v511
      %v541 = vadd.f32 %v473, %v511
      %v542 = vadd.f32 %v474, %v511
      %v543 = vadd.f32 %v475, %v511
      %v544 = vadd.f32 %v476, %v511
      %v545 = vadd.f32 %v477, %v511
      %v546 = vadd.f32 %v478, %v511
      %v547 = vadd.f32 %v479, %v511
      %v548 = vadd.f32 %v480, %v511
      %v549 = vadd.f32 %v481, %v511
      %v550 = vadd.f32 %v482, %v511
      %v551 = vadd.f32 %v483, %v511
      %v552 = vadd.f32 %v484, %v511
      %v553 = vadd.f32 %v485, %v511
      %v554 = vadd.f32 %v486, %v511
      %v555 = vadd.f32 %v487, %v511
      %v556 = vadd.f32 %v488, %v511
      %v557 = vadd.f32 %v489, %v511
      %v558 = vadd.f32 %v490, %v511
      %v559 = vadd.f32 %v491, %v511
      %v560 = vadd.f32 %v492, %v511
      %v561 = vadd.f32 %v493, %v511
      %v562 = vadd.f32 %v494, %v511
      %v563 = vadd.f32 %v495, %v511
      %v564 = vadd.f32 %v496, %v511
      %v565 = vadd.f32 %v497, %v511
      %v566 = vadd.f32 %v498, %v511
      %v567 = vadd.f32 %v499, %v511
      %v568 = vadd.f32 %v500, %v511
      %v569 = vadd.f32 %v501, %v511
      %v570 = vadd.f32 %v502, %v511
      %v571 = vadd.f32 %v503, %v511
      %v572 = vadd.f32 %v504, %v511
      %v573 = vadd.f32 %v505, %v511
      %v574 = vadd.f32 %v506, %v511
      %v575 = vadd.f32 %v507, %v511
      %v576 = vadd.f32 %v508, %v511
      %v577 = vmax.f32 %v513, 0.0
      %v578 = vmax.f32 %v514, 0.0
      %v579 = vmax.f32 %v515, 0.0
      %v580 = vmax.f32 %v516, 0.0
      %v581 = vmax.f32 %v517, 0.0
      %v582 = vmax.f32 %v518, 0.0
      %v583 = vmax.f32 %v519, 0.0
      %v584 = vmax.f32 %v520, 0.0
      %v585 = vmax.f32 %v521, 0.0
      %v586 = vmax.f32 %v522, 0.0
      %v587 = vmax.f32 %v523, 0.0
      %v588 = vmax.f32 %v524, 0.0
      %v589 = vmax.f32 %v525, 0.0
      %v590 = vmax.f32 %v526, 0.0
      %v591 = vmax.f32 %v527, 0.0
      %v592 = vmax.f32 %v528, 0.0
      %v593 = vmax.f32 %v529, 0.0
      %v594 = vmax.f32 %v530, 0.0
      %v595 = vmax.f32 %v531, 0.0
      %v596 = vmax.f32 %v532, 0.0
      %v597 = vmax.f32 %v533, 0.0
      %v598 = vmax.f32 %v534, 0.0
      %v599 = vmax.f32 %v535, 0.0
      %v600 = vmax.f32 %v536, 0.0
      %v601 = vmax.f32 %v537, 0.0
      %v602 = vmax.f32 %v538, 0.0
      %v603 = vmax.f32 %v539, 0.0
      %v604 = vmax.f32 %v540, 0.0
      %v605 = vmax.f32 %v541, 0.0
      %v606 = vmax.f32 %v542, 0.0
      %v607 = vmax.f32 %v543, 0.0
      %v608 = vmax.f32 %v544, 0.0
      %v609 = vmax.f32 %v545, 0.0
      %v610 = vmax.f32 %v546, 0.0
      %v611 = vmax.f32 %v547, 0.0
      %v612 = vmax.f32 %v548, 0.0
      %v613 = vmax.f32 %v549, 0.0
      %v614 = vmax.f32 %v550, 0.0
      %v615 = vmax.f32 %v551, 0.0
      %v616 = vmax.f32 %v552, 0.0
      %v617 = vmax.f32 %v553, 0.0
      %v618 = vmax.f32 %v554, 0.0
      %v619 = vmax.f32 %v555, 0.0
      %v620 = vmax.f32 %v556, 0.0
      %v621 = vmax.f32 %v557, 0.0
      %v622 = vmax.f32 %v558, 0.0
      %v623 = vmax.f32 %v559, 0.0
      %v624 = vmax.f32 %v560, 0.0
      %v625 = vmax.f32 %v561, 0.0
      %v626 = vmax.f32 %v562, 0.0
      %v627 = vmax.f32 %v563, 0.0
      %v628 = vmax.f32 %v564, 0.0
      %v629 = vmax.f32 %v565, 0.0
      %v630 = vmax.f32 %v566, 0.0
      %v631 = vmax.f32 %v567, 0.0
      %v632 = vmax.f32 %v568, 0.0
      %v633 = vmax.f32 %v569, 0.0
      %v634 = vmax.f32 %v570, 0.0
      %v635 = vmax.f32 %v571, 0.0
      %v636 = vmax.f32 %v572, 0.0
      %v637 = vmax.f32 %v573, 0.0
      %v638 = vmax.f32 %v574, 0.0
      %v639 = vmax.f32 %v575, 0.0
      %v640 = vmax.f32 %v576, 0.0
      %v641 = vpack.c.bf16 %v577, %v577
      %v642 = vpack.c.bf16 %v578, %v578
      %v643 = vpack.c.bf16 %v579, %v579
      %v644 = vpack.c.bf16 %v580, %v580
      %v645 = vpack.c.bf16 %v581, %v581
      %v646 = vpack.c.bf16 %v582, %v582
      %v647 = vpack.c.bf16 %v583, %v583
      %v648 = vpack.c.bf16 %v584, %v584
      %v649 = vpack.c.bf16 %v585, %v585
      %v650 = vpack.c.bf16 %v586, %v586
      %v651 = vpack.c.bf16 %v587, %v587
      %v652 = vpack.c.bf16 %v588, %v588
      %v653 = vpack.c.bf16 %v589, %v589
      %v654 = vpack.c.bf16 %v590, %v590
      %v655 = vpack.c.bf16 %v591, %v591
      %v656 = vpack.c.bf16 %v592, %v592
      %v657 = vpack.c.bf16 %v593, %v593
      %v658 = vpack.c.bf16 %v594, %v594
      %v659 = vpack.c.bf16 %v595, %v595
      %v660 = vpack.c.bf16 %v596, %v596
      %v661 = vpack.c.bf16 %v597, %v597
      %v662 = vpack.c.bf16 %v598, %v598
      %v663 = vpack.c.bf16 %v599, %v599
      %v664 = vpack.c.bf16 %v600, %v600
      %v665 = vpack.c.bf16 %v601, %v601
      %v666 = vpack.c.bf16 %v602, %v602
      %v667 = vpack.c.bf16 %v603, %v603
      %v668 = vpack.c.bf16 %v604, %v604
      %v669 = vpack.c.bf16 %v605, %v605
      %v670 = vpack.c.bf16 %v606, %v606
      %v671 = vpack.c.bf16 %v607, %v607
      %v672 = vpack.c.bf16 %v608, %v608
      %v673 = vpack.c.bf16 %v609, %v609
      %v674 = vpack.c.bf16 %v610, %v610
      %v675 = vpack.c.bf16 %v611, %v611
      %v676 = vpack.c.bf16 %v612, %v612
      %v677 = vpack.c.bf16 %v613, %v613
      %v678 = vpack.c.bf16 %v614, %v614
      %v679 = vpack.c.bf16 %v615, %v615
      %v680 = vpack.c.bf16 %v616, %v616
      %v681 = vpack.c.bf16 %v617, %v617
      %v682 = vpack.c.bf16 %v618, %v618
      %v683 = vpack.c.bf16 %v619, %v619
      %v684 = vpack.c.bf16 %v620, %v620
      %v685 = vpack.c.bf16 %v621, %v621
      %v686 = vpack.c.bf16 %v622, %v622
      %v687 = vpack.c.bf16 %v623, %v623
      %v688 = vpack.c.bf16 %v624, %v624
      %v689 = vpack.c.bf16 %v625, %v625
      %v690 = vpack.c.bf16 %v626, %v626
      %v691 = vpack.c.bf16 %v627, %v627
      %v692 = vpack.c.bf16 %v628, %v628
      %v693 = vpack.c.bf16 %v629, %v629
      %v694 = vpack.c.bf16 %v630, %v630
      %v695 = vpack.c.bf16 %v631, %v631
      %v696 = vpack.c.bf16 %v632, %v632
      %v697 = vpack.c.bf16 %v633, %v633
      %v698 = vpack.c.bf16 %v634, %v634
      %v699 = vpack.c.bf16 %v635, %v635
      %v700 = vpack.c.bf16 %v636, %v636
      %v701 = vpack.c.bf16 %v637, %v637
      %v702 = vpack.c.bf16 %v638, %v638
      %v703 = vpack.c.bf16 %v639, %v639
      %v704 = vpack.c.bf16 %v640, %v640
      %s705 = sshra.s32 %s312, 3
      %s706 = sand.u32 %s312, 7
      %s707 = smul.addr %s705, 4
      %s708 = scalar_lea.vmem %s306, %s707
      %709 = vst [vmem:[%s708] sm:$0xf] %v641
      %710 = vst [vmem:[%s708 + $0x4] sm:$0xf] %v642
      %711 = vst [vmem:[%s708 + $0x8] sm:$0xf] %v643
      %712 = vst [vmem:[%s708 + $0xc] sm:$0xf] %v644
      %713 = vst [vmem:[%s708 + $0x10] sm:$0xf] %v645
      %714 = vst [vmem:[%s708 + $0x14] sm:$0xf] %v646
      %715 = vst [vmem:[%s708 + $0x18] sm:$0xf] %v647
      %716 = vst [vmem:[%s708 + $0x1c] sm:$0xf] %v648
      %717 = vst [vmem:[%s708 + $0x20] sm:$0xf] %v649
      %718 = vst [vmem:[%s708 + $0x24] sm:$0xf] %v650
      %719 = vst [vmem:[%s708 + $0x28] sm:$0xf] %v651
      %720 = vst [vmem:[%s708 + $0x2c] sm:$0xf] %v652
      %721 = vst [vmem:[%s708 + $0x30] sm:$0xf] %v653
      %722 = vst [vmem:[%s708 + $0x34] sm:$0xf] %v654
      %723 = vst [vmem:[%s708 + $0x38] sm:$0xf] %v655
      %724 = vst [vmem:[%s708 + $0x3c] sm:$0xf] %v656
      %725 = vst [vmem:[%s708 + $0x40] sm:$0xf] %v657
      %726 = vst [vmem:[%s708 + $0x44] sm:$0xf] %v658
      %727 = vst [vmem:[%s708 + $0x48] sm:$0xf] %v659
      %728 = vst [vmem:[%s708 + $0x4c] sm:$0xf] %v660
      %729 = vst [vmem:[%s708 + $0x50] sm:$0xf] %v661
      %730 = vst [vmem:[%s708 + $0x54] sm:$0xf] %v662
      %731 = vst [vmem:[%s708 + $0x58] sm:$0xf] %v663
      %732 = vst [vmem:[%s708 + $0x5c] sm:$0xf] %v664
      %733 = vst [vmem:[%s708 + $0x60] sm:$0xf] %v665
      %734 = vst [vmem:[%s708 + $0x64] sm:$0xf] %v666
      %735 = vst [vmem:[%s708 + $0x68] sm:$0xf] %v667
      %736 = vst [vmem:[%s708 + $0x6c] sm:$0xf] %v668
      %737 = vst [vmem:[%s708 + $0x70] sm:$0xf] %v669
      %738 = vst [vmem:[%s708 + $0x74] sm:$0xf] %v670
      %739 = vst [vmem:[%s708 + $0x78] sm:$0xf] %v671
      %740 = vst [vmem:[%s708 + $0x7c] sm:$0xf] %v672
      %741 = vst [vmem:[%s708 + $0x80] sm:$0xf] %v673
      %742 = vst [vmem:[%s708 + $0x84] sm:$0xf] %v674
      %743 = vst [vmem:[%s708 + $0x88] sm:$0xf] %v675
      %744 = vst [vmem:[%s708 + $0x8c] sm:$0xf] %v676
      %745 = vst [vmem:[%s708 + $0x90] sm:$0xf] %v677
      %746 = vst [vmem:[%s708 + $0x94] sm:$0xf] %v678
      %747 = vst [vmem:[%s708 + $0x98] sm:$0xf] %v679
      %748 = vst [vmem:[%s708 + $0x9c] sm:$0xf] %v680
      %749 = vst [vmem:[%s708 + $0xa0] sm:$0xf] %v681
      %750 = vst [vmem:[%s708 + $0xa4] sm:$0xf] %v682
      %751 = vst [vmem:[%s708 + $0xa8] sm:$0xf] %v683
      %752 = vst [vmem:[%s708 + $0xac] sm:$0xf] %v684
      %753 = vst [vmem:[%s708 + $0xb0] sm:$0xf] %v685
      %754 = vst [vmem:[%s708 + $0xb4] sm:$0xf] %v686
      %755 = vst [vmem:[%s708 + $0xb8] sm:$0xf] %v687
      %756 = vst [vmem:[%s708 + $0xbc] sm:$0xf] %v688
      %757 = vst [vmem:[%s708 + $0xc0] sm:$0xf] %v689
      %758 = vst [vmem:[%s708 + $0xc4] sm:$0xf] %v690
      %759 = vst [vmem:[%s708 + $0xc8] sm:$0xf] %v691
      %760 = vst [vmem:[%s708 + $0xcc] sm:$0xf] %v692
      %761 = vst [vmem:[%s708 + $0xd0] sm:$0xf] %v693
      %762 = vst [vmem:[%s708 + $0xd4] sm:$0xf] %v694
      %763 = vst [vmem:[%s708 + $0xd8] sm:$0xf] %v695
      %764 = vst [vmem:[%s708 + $0xdc] sm:$0xf] %v696
      %765 = vst [vmem:[%s708 + $0xe0] sm:$0xf] %v697
      %766 = vst [vmem:[%s708 + $0xe4] sm:$0xf] %v698
      %767 = vst [vmem:[%s708 + $0xe8] sm:$0xf] %v699
      %768 = vst [vmem:[%s708 + $0xec] sm:$0xf] %v700
      %769 = vst [vmem:[%s708 + $0xf0] sm:$0xf] %v701
      %770 = vst [vmem:[%s708 + $0xf4] sm:$0xf] %v702
      %771 = vst [vmem:[%s708 + $0xf8] sm:$0xf] %v703
      %772 = vst [vmem:[%s708 + $0xfc] sm:$0xf] %v704
      %v773 = vld [vmem:[#allocation2] sm:$0x1]
      %v774 = vadd.f32 %v577, %v578
      %v775 = vadd.f32 %v774, %v579
      %v776 = vadd.f32 %v775, %v580
      %v777 = vadd.f32 %v776, %v581
      %v778 = vadd.f32 %v777, %v582
      %v779 = vadd.f32 %v778, %v583
      %v780 = vadd.f32 %v779, %v584
      %v781 = vadd.f32 %v780, %v585
      %v782 = vadd.f32 %v781, %v586
      %v783 = vadd.f32 %v782, %v587
      %v784 = vadd.f32 %v783, %v588
      %v785 = vadd.f32 %v784, %v589
      %v786 = vadd.f32 %v785, %v590
      %v787 = vadd.f32 %v786, %v591
      %v788 = vadd.f32 %v787, %v592
      %v789 = vadd.f32 %v788, %v593
      %v790 = vadd.f32 %v789, %v594
      %v791 = vadd.f32 %v790, %v595
      %v792 = vadd.f32 %v791, %v596
      %v793 = vadd.f32 %v792, %v597
      %v794 = vadd.f32 %v793, %v598
      %v795 = vadd.f32 %v794, %v599
      %v796 = vadd.f32 %v795, %v600
      %v797 = vadd.f32 %v796, %v601
      %v798 = vadd.f32 %v797, %v602
      %v799 = vadd.f32 %v798, %v603
      %v800 = vadd.f32 %v799, %v604
      %v801 = vadd.f32 %v800, %v605
      %v802 = vadd.f32 %v801, %v606
      %v803 = vadd.f32 %v802, %v607
      %v804 = vadd.f32 %v803, %v608
      %v805 = vadd.f32 %v804, %v609
      %v806 = vadd.f32 %v805, %v610
      %v807 = vadd.f32 %v806, %v611
      %v808 = vadd.f32 %v807, %v612
      %v809 = vadd.f32 %v808, %v613
      %v810 = vadd.f32 %v809, %v614
      %v811 = vadd.f32 %v810, %v615
      %v812 = vadd.f32 %v811, %v616
      %v813 = vadd.f32 %v812, %v617
      %v814 = vadd.f32 %v813, %v618
      %v815 = vadd.f32 %v814, %v619
      %v816 = vadd.f32 %v815, %v620
      %v817 = vadd.f32 %v816, %v621
      %v818 = vadd.f32 %v817, %v622
      %v819 = vadd.f32 %v818, %v623
      %v820 = vadd.f32 %v819, %v624
      %v821 = vadd.f32 %v820, %v625
      %v822 = vadd.f32 %v821, %v626
      %v823 = vadd.f32 %v822, %v627
      %v824 = vadd.f32 %v823, %v628
      %v825 = vadd.f32 %v824, %v629
      %v826 = vadd.f32 %v825, %v630
      %v827 = vadd.f32 %v826, %v631
      %v828 = vadd.f32 %v827, %v632
      %v829 = vadd.f32 %v828, %v633
      %v830 = vadd.f32 %v829, %v634
      %v831 = vadd.f32 %v830, %v635
      %v832 = vadd.f32 %v831, %v636
      %v833 = vadd.f32 %v832, %v637
      %v834 = vadd.f32 %v833, %v638
      %v835 = vadd.f32 %v834, %v639
      %v836 = vadd.f32 %v835, %v640
      %v837 = vrot.slane %v836, 4
      %v838 = vadd.f32 %v836, %v837
      %v839 = vrot.slane %v838, 2
      %v840 = vadd.f32 %v838, %v839
      %v841 = vrot.slane %v840, 1
      %v842 = vadd.f32 %v840, %v841
      %v843 = vadd.f32 %v773, %v842
      %844 = vst [vmem:[#allocation2] sm:$0x1] %v843
      %p845 = scmp.eq.s32.totalorder %s23, 1
      // Predicated region
      $region53: #{conv3d_for_g_forward.3} parent=47 // pred_check
        %p846 = pneg %p845
      $region54: #{conv3d_for_g_forward.3} parent=47 // pred_check_branch
        %848 = sbr.rel (%p846) target = $region56
      $region55: #{conv3d_for_g_forward.3} parent=47 // pred_region
        %v849 = vld [vmem:[#allocation2] sm:$0x1]
        %v850 = vmul.f32 %v849, 0.00024414063
        %v851 = vld [vmem:[%s3] sm:$0xff]
        %v852 = vld [vmem:[%s3 + $0x8] sm:$0xff]
        %v853 = vld [vmem:[%s3 + $0x10] sm:$0xff]
        %v854 = vld [vmem:[%s3 + $0x18] sm:$0xff]
        %v855 = vld [vmem:[%s3 + $0x20] sm:$0xff]
        %v856 = vld [vmem:[%s3 + $0x28] sm:$0xff]
        %v857 = vld [vmem:[%s3 + $0x30] sm:$0xff]
        %v858 = vld [vmem:[%s3 + $0x38] sm:$0xff]
        %v859 = vld [vmem:[%s3 + $0x40] sm:$0xff]
        %v860 = vld [vmem:[%s3 + $0x48] sm:$0xff]
        %v861 = vld [vmem:[%s3 + $0x50] sm:$0xff]
        %v862 = vld [vmem:[%s3 + $0x58] sm:$0xff]
        %v863 = vld [vmem:[%s3 + $0x60] sm:$0xff]
        %v864 = vld [vmem:[%s3 + $0x68] sm:$0xff]
        %v865 = vld [vmem:[%s3 + $0x70] sm:$0xff]
        %v866 = vld [vmem:[%s3 + $0x78] sm:$0xff]
        %v867 = vld [vmem:[%s4] sm:$0x1]
        %868 = vmatpush.msra.mxu0 %v866
        %869 = vmatpush.msra.mxu0 %v865
        %870 = vmatpush.msra.mxu0 %v864
        %871 = vmatpush.msra.mxu0 %v863
        %872 = vmatpush.msra.mxu0 %v862
        %873 = vmatpush.msra.mxu0 %v861
        %874 = vmatpush.msra.mxu0 %v860
        %875 = vmatpush.msra.mxu0 %v859
        %876 = vmatpush.msra.mxu0 %v858
        %877 = vmatpush.msra.mxu0 %v857
        %878 = vmatpush.msra.mxu0 %v856
        %879 = vmatpush.msra.mxu0 %v855
        %880 = vmatpush.msra.mxu0 %v854
        %881 = vmatpush.msra.mxu0 %v853
        %882 = vmatpush.msra.mxu0 %v852
        %883 = vmatpush.msra.mxu0 %v851
        %884 = vmatmul.f32.gmra.mxu0 %v850
        %v885 = vpop.f32.mrf.mxu0
        %v886 = vadd.f32 %v867, %v885
        %887 = vdwg.mxu0
        %v888 = vmax.f32 %v886, 0.0
        %v889 = vld [vmem:[%s5] sm:$0xff]
        %v890 = vld [vmem:[%s5 + $0x8] sm:$0xff]
        %v891 = vld [vmem:[%s5 + $0x10] sm:$0xff]
        %v892 = vld [vmem:[%s5 + $0x18] sm:$0xff]
        %v893 = vld [vmem:[%s5 + $0x20] sm:$0xff]
        %v894 = vld [vmem:[%s5 + $0x28] sm:$0xff]
        %v895 = vld [vmem:[%s5 + $0x30] sm:$0xff]
        %v896 = vld [vmem:[%s5 + $0x38] sm:$0xff]
        %v897 = vld [vmem:[%s5 + $0x40] sm:$0xff]
        %v898 = vld [vmem:[%s5 + $0x48] sm:$0xff]
        %v899 = vld [vmem:[%s5 + $0x50] sm:$0xff]
        %v900 = vld [vmem:[%s5 + $0x58] sm:$0xff]
        %v901 = vld [vmem:[%s5 + $0x60] sm:$0xff]
        %v902 = vld [vmem:[%s5 + $0x68] sm:$0xff]
        %v903 = vld [vmem:[%s5 + $0x70] sm:$0xff]
        %v904 = vld [vmem:[%s5 + $0x78] sm:$0xff]
        %v905 = vld [vmem:[%s6] sm:$0x1]
        %906 = vmatpush.msra.mxu0 %v904
        %907 = vmatpush.msra.mxu0 %v903
        %908 = vmatpush.msra.mxu0 %v902
        %909 = vmatpush.msra.mxu0 %v901
        %910 = vmatpush.msra.mxu0 %v900
        %911 = vmatpush.msra.mxu0 %v899
        %912 = vmatpush.msra.mxu0 %v898
        %913 = vmatpush.msra.mxu0 %v897
        %914 = vmatpush.msra.mxu0 %v896
        %915 = vmatpush.msra.mxu0 %v895
        %916 = vmatpush.msra.mxu0 %v894
        %917 = vmatpush.msra.mxu0 %v893
        %918 = vmatpush.msra.mxu0 %v892
        %919 = vmatpush.msra.mxu0 %v891
        %920 = vmatpush.msra.mxu0 %v890
        %921 = vmatpush.msra.mxu0 %v889
        %922 = vmatmul.f32.gmra.mxu0 %v888
        %v923 = vpop.f32.mrf.mxu0
        %v924 = vadd.f32 %v905, %v923
        %925 = vdwg.mxu0
        %v926 = vxor.u32 %v924, 2147483648
        %v927 = vmul.f32 %v926, 1.442695
        %v928 = vpow.pop %v927
        %v929 = vadd.f32 %v928, 1.0
        %v930 = vrcp.pop %v929
        %v931 = vmul.f32 %v929, %v930
        %v932 = vsub.f32 1.0, %v931
        %v933 = vmul.f32 %v930, %v932
        %v934 = vadd.f32 %v930, %v933
        %vm935 = vweird.f32 %v929
        %vm936 = vweird.f32 %v930
        %vm937 = vmor %vm935, %vm936
        %v938 = vsel %vm937, %v930, %v934
        %v939 = vand.u32 2147483647, %v929
        %vm940 = vcmp.eq.f32.partialorder %v939, 8.507059e+37
        %v941 = vand.u32 %v929, 2147483648
        %v942 = vor.u32 1.1754944e-38, %v941
        %v943 = vsel %vm940, %v942, %v938
        %v944 = vmul.f32 1.0, %v943
        loop: start=0, step=1, limit=2
        $region57: #{conv3d_for_g_forward.3} parent=55 // loop_pre_header
          _
        $region58: #{conv3d_for_g_forward.3} parent=55 // loop_header
          %s946 = sphi 0, %s950
          %p947 = scmp.ge.s32.totalorder %s946, 2
        $region59: #{conv3d_for_g_forward.3} parent=55 // loop_header_branch
          %949 = sbr.rel (%p947) target = $region63
        $region60: #{conv3d_for_g_forward.3} parent=55 // loop_body
          %s951 = smul.u32 %s946, 512
          %s952 = sshra.s32 %s951, 3
          %s953 = sand.u32 %s951, 7
          %s954 = smul.addr %s952, 4
          %s955 = scalar_lea.vmem %s306, %s954
          %v956 = vld [vmem:[%s955] sm:$0xf]
          %v957 = vld [vmem:[%s955 + $0x4] sm:$0xf]
          %v958 = vld [vmem:[%s955 + $0x8] sm:$0xf]
          %v959 = vld [vmem:[%s955 + $0xc] sm:$0xf]
          %v960 = vld [vmem:[%s955 + $0x10] sm:$0xf]
          %v961 = vld [vmem:[%s955 + $0x14] sm:$0xf]
          %v962 = vld [vmem:[%s955 + $0x18] sm:$0xf]
          %v963 = vld [vmem:[%s955 + $0x1c] sm:$0xf]
          %v964 = vld [vmem:[%s955 + $0x20] sm:$0xf]
          %v965 = vld [vmem:[%s955 + $0x24] sm:$0xf]
          %v966 = vld [vmem:[%s955 + $0x28] sm:$0xf]
          %v967 = vld [vmem:[%s955 + $0x2c] sm:$0xf]
          %v968 = vld [vmem:[%s955 + $0x30] sm:$0xf]
          %v969 = vld [vmem:[%s955 + $0x34] sm:$0xf]
          %v970 = vld [vmem:[%s955 + $0x38] sm:$0xf]
          %v971 = vld [vmem:[%s955 + $0x3c] sm:$0xf]
          %v972 = vld [vmem:[%s955 + $0x40] sm:$0xf]
          %v973 = vld [vmem:[%s955 + $0x44] sm:$0xf]
          %v974 = vld [vmem:[%s955 + $0x48] sm:$0xf]
          %v975 = vld [vmem:[%s955 + $0x4c] sm:$0xf]
          %v976 = vld [vmem:[%s955 + $0x50] sm:$0xf]
          %v977 = vld [vmem:[%s955 + $0x54] sm:$0xf]
          %v978 = vld [vmem:[%s955 + $0x58] sm:$0xf]
          %v979 = vld [vmem:[%s955 + $0x5c] sm:$0xf]
          %v980 = vld [vmem:[%s955 + $0x60] sm:$0xf]
          %v981 = vld [vmem:[%s955 + $0x64] sm:$0xf]
          %v982 = vld [vmem:[%s955 + $0x68] sm:$0xf]
          %v983 = vld [vmem:[%s955 + $0x6c] sm:$0xf]
          %v984 = vld [vmem:[%s955 + $0x70] sm:$0xf]
          %v985 = vld [vmem:[%s955 + $0x74] sm:$0xf]
          %v986 = vld [vmem:[%s955 + $0x78] sm:$0xf]
          %v987 = vld [vmem:[%s955 + $0x7c] sm:$0xf]
          %v988 = vld [vmem:[%s955 + $0x80] sm:$0xf]
          %v989 = vld [vmem:[%s955 + $0x84] sm:$0xf]
          %v990 = vld [vmem:[%s955 + $0x88] sm:$0xf]
          %v991 = vld [vmem:[%s955 + $0x8c] sm:$0xf]
          %v992 = vld [vmem:[%s955 + $0x90] sm:$0xf]
          %v993 = vld [vmem:[%s955 + $0x94] sm:$0xf]
          %v994 = vld [vmem:[%s955 + $0x98] sm:$0xf]
          %v995 = vld [vmem:[%s955 + $0x9c] sm:$0xf]
          %v996 = vld [vmem:[%s955 + $0xa0] sm:$0xf]
          %v997 = vld [vmem:[%s955 + $0xa4] sm:$0xf]
          %v998 = vld [vmem:[%s955 + $0xa8] sm:$0xf]
          %v999 = vld [vmem:[%s955 + $0xac] sm:$0xf]
          %v1000 = vld [vmem:[%s955 + $0xb0] sm:$0xf]
          %v1001 = vld [vmem:[%s955 + $0xb4] sm:$0xf]
          %v1002 = vld [vmem:[%s955 + $0xb8] sm:$0xf]
          %v1003 = vld [vmem:[%s955 + $0xbc] sm:$0xf]
          %v1004 = vld [vmem:[%s955 + $0xc0] sm:$0xf]
          %v1005 = vld [vmem:[%s955 + $0xc4] sm:$0xf]
          %v1006 = vld [vmem:[%s955 + $0xc8] sm:$0xf]
          %v1007 = vld [vmem:[%s955 + $0xcc] sm:$0xf]
          %v1008 = vld [vmem:[%s955 + $0xd0] sm:$0xf]
          %v1009 = vld [vmem:[%s955 + $0xd4] sm:$0xf]
          %v1010 = vld [vmem:[%s955 + $0xd8] sm:$0xf]
          %v1011 = vld [vmem:[%s955 + $0xdc] sm:$0xf]
          %v1012 = vld [vmem:[%s955 + $0xe0] sm:$0xf]
          %v1013 = vld [vmem:[%s955 + $0xe4] sm:$0xf]
          %v1014 = vld [vmem:[%s955 + $0xe8] sm:$0xf]
          %v1015 = vld [vmem:[%s955 + $0xec] sm:$0xf]
          %v1016 = vld [vmem:[%s955 + $0xf0] sm:$0xf]
          %v1017 = vld [vmem:[%s955 + $0xf4] sm:$0xf]
          %v1018 = vld [vmem:[%s955 + $0xf8] sm:$0xf]
          %v1019 = vld [vmem:[%s955 + $0xfc] sm:$0xf]
          %v1020 = vunpack.c.l.bf16 %v956
          %v1021 = vunpack.c.l.bf16 %v957
          %v1022 = vunpack.c.l.bf16 %v958
          %v1023 = vunpack.c.l.bf16 %v959
          %v1024 = vunpack.c.l.bf16 %v960
          %v1025 = vunpack.c.l.bf16 %v961
          %v1026 = vunpack.c.l.bf16 %v962
          %v1027 = vunpack.c.l.bf16 %v963
          %v1028 = vunpack.c.l.bf16 %v964
          %v1029 = vunpack.c.l.bf16 %v965
          %v1030 = vunpack.c.l.bf16 %v966
          %v1031 = vunpack.c.l.bf16 %v967
          %v1032 = vunpack.c.l.bf16 %v968
          %v1033 = vunpack.c.l.bf16 %v969
          %v1034 = vunpack.c.l.bf16 %v970
          %v1035 = vunpack.c.l.bf16 %v971
          %v1036 = vunpack.c.l.bf16 %v972
          %v1037 = vunpack.c.l.bf16 %v973
          %v1038 = vunpack.c.l.bf16 %v974
          %v1039 = vunpack.c.l.bf16 %v975
          %v1040 = vunpack.c.l.bf16 %v976
          %v1041 = vunpack.c.l.bf16 %v977
          %v1042 = vunpack.c.l.bf16 %v978
          %v1043 = vunpack.c.l.bf16 %v979
          %v1044 = vunpack.c.l.bf16 %v980
          %v1045 = vunpack.c.l.bf16 %v981
          %v1046 = vunpack.c.l.bf16 %v982
          %v1047 = vunpack.c.l.bf16 %v983
          %v1048 = vunpack.c.l.bf16 %v984
          %v1049 = vunpack.c.l.bf16 %v985
          %v1050 = vunpack.c.l.bf16 %v986
          %v1051 = vunpack.c.l.bf16 %v987
          %v1052 = vunpack.c.l.bf16 %v988
          %v1053 = vunpack.c.l.bf16 %v989
          %v1054 = vunpack.c.l.bf16 %v990
          %v1055 = vunpack.c.l.bf16 %v991
          %v1056 = vunpack.c.l.bf16 %v992
          %v1057 = vunpack.c.l.bf16 %v993
          %v1058 = vunpack.c.l.bf16 %v994
          %v1059 = vunpack.c.l.bf16 %v995
          %v1060 = vunpack.c.l.bf16 %v996
          %v1061 = vunpack.c.l.bf16 %v997
          %v1062 = vunpack.c.l.bf16 %v998
          %v1063 = vunpack.c.l.bf16 %v999
          %v1064 = vunpack.c.l.bf16 %v1000
          %v1065 = vunpack.c.l.bf16 %v1001
          %v1066 = vunpack.c.l.bf16 %v1002
          %v1067 = vunpack.c.l.bf16 %v1003
          %v1068 = vunpack.c.l.bf16 %v1004
          %v1069 = vunpack.c.l.bf16 %v1005
          %v1070 = vunpack.c.l.bf16 %v1006
          %v1071 = vunpack.c.l.bf16 %v1007
          %v1072 = vunpack.c.l.bf16 %v1008
          %v1073 = vunpack.c.l.bf16 %v1009
          %v1074 = vunpack.c.l.bf16 %v1010
          %v1075 = vunpack.c.l.bf16 %v1011
          %v1076 = vunpack.c.l.bf16 %v1012
          %v1077 = vunpack.c.l.bf16 %v1013
          %v1078 = vunpack.c.l.bf16 %v1014
          %v1079 = vunpack.c.l.bf16 %v1015
          %v1080 = vunpack.c.l.bf16 %v1016
          %v1081 = vunpack.c.l.bf16 %v1017
          %v1082 = vunpack.c.l.bf16 %v1018
          %v1083 = vunpack.c.l.bf16 %v1019
          %v1084 = vperm.slane %v944, 0
          %v1085 = vmul.f32 %v1020, %v1084
          %v1086 = vmul.f32 %v1021, %v1084
          %v1087 = vmul.f32 %v1022, %v1084
          %v1088 = vmul.f32 %v1023, %v1084
          %v1089 = vmul.f32 %v1024, %v1084
          %v1090 = vmul.f32 %v1025, %v1084
          %v1091 = vmul.f32 %v1026, %v1084
          %v1092 = vmul.f32 %v1027, %v1084
          %v1093 = vmul.f32 %v1028, %v1084
          %v1094 = vmul.f32 %v1029, %v1084
          %v1095 = vmul.f32 %v1030, %v1084
          %v1096 = vmul.f32 %v1031, %v1084
          %v1097 = vmul.f32 %v1032, %v1084
          %v1098 = vmul.f32 %v1033, %v1084
          %v1099 = vmul.f32 %v1034, %v1084
          %v1100 = vmul.f32 %v1035, %v1084
          %v1101 = vmul.f32 %v1036, %v1084
          %v1102 = vmul.f32 %v1037, %v1084
          %v1103 = vmul.f32 %v1038, %v1084
          %v1104 = vmul.f32 %v1039, %v1084
          %v1105 = vmul.f32 %v1040, %v1084
          %v1106 = vmul.f32 %v1041, %v1084
          %v1107 = vmul.f32 %v1042, %v1084
          %v1108 = vmul.f32 %v1043, %v1084
          %v1109 = vmul.f32 %v1044, %v1084
          %v1110 = vmul.f32 %v1045, %v1084
          %v1111 = vmul.f32 %v1046, %v1084
          %v1112 = vmul.f32 %v1047, %v1084
          %v1113 = vmul.f32 %v1048, %v1084
          %v1114 = vmul.f32 %v1049, %v1084
          %v1115 = vmul.f32 %v1050, %v1084
          %v1116 = vmul.f32 %v1051, %v1084
          %v1117 = vmul.f32 %v1052, %v1084
          %v1118 = vmul.f32 %v1053, %v1084
          %v1119 = vmul.f32 %v1054, %v1084
          %v1120 = vmul.f32 %v1055, %v1084
          %v1121 = vmul.f32 %v1056, %v1084
          %v1122 = vmul.f32 %v1057, %v1084
          %v1123 = vmul.f32 %v1058, %v1084
          %v1124 = vmul.f32 %v1059, %v1084
          %v1125 = vmul.f32 %v1060, %v1084
          %v1126 = vmul.f32 %v1061, %v1084
          %v1127 = vmul.f32 %v1062, %v1084
          %v1128 = vmul.f32 %v1063, %v1084
          %v1129 = vmul.f32 %v1064, %v1084
          %v1130 = vmul.f32 %v1065, %v1084
          %v1131 = vmul.f32 %v1066, %v1084
          %v1132 = vmul.f32 %v1067, %v1084
          %v1133 = vmul.f32 %v1068, %v1084
          %v1134 = vmul.f32 %v1069, %v1084
          %v1135 = vmul.f32 %v1070, %v1084
          %v1136 = vmul.f32 %v1071, %v1084
          %v1137 = vmul.f32 %v1072, %v1084
          %v1138 = vmul.f32 %v1073, %v1084
          %v1139 = vmul.f32 %v1074, %v1084
          %v1140 = vmul.f32 %v1075, %v1084
          %v1141 = vmul.f32 %v1076, %v1084
          %v1142 = vmul.f32 %v1077, %v1084
          %v1143 = vmul.f32 %v1078, %v1084
          %v1144 = vmul.f32 %v1079, %v1084
          %v1145 = vmul.f32 %v1080, %v1084
          %v1146 = vmul.f32 %v1081, %v1084
          %v1147 = vmul.f32 %v1082, %v1084
          %v1148 = vmul.f32 %v1083, %v1084
          %v1149 = vpack.c.bf16 %v1085, %v1085
          %v1150 = vpack.c.bf16 %v1086, %v1086
          %v1151 = vpack.c.bf16 %v1087, %v1087
          %v1152 = vpack.c.bf16 %v1088, %v1088
          %v1153 = vpack.c.bf16 %v1089, %v1089
          %v1154 = vpack.c.bf16 %v1090, %v1090
          %v1155 = vpack.c.bf16 %v1091, %v1091
          %v1156 = vpack.c.bf16 %v1092, %v1092
          %v1157 = vpack.c.bf16 %v1093, %v1093
          %v1158 = vpack.c.bf16 %v1094, %v1094
          %v1159 = vpack.c.bf16 %v1095, %v1095
          %v1160 = vpack.c.bf16 %v1096, %v1096
          %v1161 = vpack.c.bf16 %v1097, %v1097
          %v1162 = vpack.c.bf16 %v1098, %v1098
          %v1163 = vpack.c.bf16 %v1099, %v1099
          %v1164 = vpack.c.bf16 %v1100, %v1100
          %v1165 = vpack.c.bf16 %v1101, %v1101
          %v1166 = vpack.c.bf16 %v1102, %v1102
          %v1167 = vpack.c.bf16 %v1103, %v1103
          %v1168 = vpack.c.bf16 %v1104, %v1104
          %v1169 = vpack.c.bf16 %v1105, %v1105
          %v1170 = vpack.c.bf16 %v1106, %v1106
          %v1171 = vpack.c.bf16 %v1107, %v1107
          %v1172 = vpack.c.bf16 %v1108, %v1108
          %v1173 = vpack.c.bf16 %v1109, %v1109
          %v1174 = vpack.c.bf16 %v1110, %v1110
          %v1175 = vpack.c.bf16 %v1111, %v1111
          %v1176 = vpack.c.bf16 %v1112, %v1112
          %v1177 = vpack.c.bf16 %v1113, %v1113
          %v1178 = vpack.c.bf16 %v1114, %v1114
          %v1179 = vpack.c.bf16 %v1115, %v1115
          %v1180 = vpack.c.bf16 %v1116, %v1116
          %v1181 = vpack.c.bf16 %v1117, %v1117
          %v1182 = vpack.c.bf16 %v1118, %v1118
          %v1183 = vpack.c.bf16 %v1119, %v1119
          %v1184 = vpack.c.bf16 %v1120, %v1120
          %v1185 = vpack.c.bf16 %v1121, %v1121
          %v1186 = vpack.c.bf16 %v1122, %v1122
          %v1187 = vpack.c.bf16 %v1123, %v1123
          %v1188 = vpack.c.bf16 %v1124, %v1124
          %v1189 = vpack.c.bf16 %v1125, %v1125
          %v1190 = vpack.c.bf16 %v1126, %v1126
          %v1191 = vpack.c.bf16 %v1127, %v1127
          %v1192 = vpack.c.bf16 %v1128, %v1128
          %v1193 = vpack.c.bf16 %v1129, %v1129
          %v1194 = vpack.c.bf16 %v1130, %v1130
          %v1195 = vpack.c.bf16 %v1131, %v1131
          %v1196 = vpack.c.bf16 %v1132, %v1132
          %v1197 = vpack.c.bf16 %v1133, %v1133
          %v1198 = vpack.c.bf16 %v1134, %v1134
          %v1199 = vpack.c.bf16 %v1135, %v1135
          %v1200 = vpack.c.bf16 %v1136, %v1136
          %v1201 = vpack.c.bf16 %v1137, %v1137
          %v1202 = vpack.c.bf16 %v1138, %v1138
          %v1203 = vpack.c.bf16 %v1139, %v1139
          %v1204 = vpack.c.bf16 %v1140, %v1140
          %v1205 = vpack.c.bf16 %v1141, %v1141
          %v1206 = vpack.c.bf16 %v1142, %v1142
          %v1207 = vpack.c.bf16 %v1143, %v1143
          %v1208 = vpack.c.bf16 %v1144, %v1144
          %v1209 = vpack.c.bf16 %v1145, %v1145
          %v1210 = vpack.c.bf16 %v1146, %v1146
          %v1211 = vpack.c.bf16 %v1147, %v1147
          %v1212 = vpack.c.bf16 %v1148, %v1148
          %1213 = vst [vmem:[%s955] sm:$0xf] %v1149
          %1214 = vst [vmem:[%s955 + $0x4] sm:$0xf] %v1150
          %1215 = vst [vmem:[%s955 + $0x8] sm:$0xf] %v1151
          %1216 = vst [vmem:[%s955 + $0xc] sm:$0xf] %v1152
          %1217 = vst [vmem:[%s955 + $0x10] sm:$0xf] %v1153
          %1218 = vst [vmem:[%s955 + $0x14] sm:$0xf] %v1154
          %1219 = vst [vmem:[%s955 + $0x18] sm:$0xf] %v1155
          %1220 = vst [vmem:[%s955 + $0x1c] sm:$0xf] %v1156
          %1221 = vst [vmem:[%s955 + $0x20] sm:$0xf] %v1157
          %1222 = vst [vmem:[%s955 + $0x24] sm:$0xf] %v1158
          %1223 = vst [vmem:[%s955 + $0x28] sm:$0xf] %v1159
          %1224 = vst [vmem:[%s955 + $0x2c] sm:$0xf] %v1160
          %1225 = vst [vmem:[%s955 + $0x30] sm:$0xf] %v1161
          %1226 = vst [vmem:[%s955 + $0x34] sm:$0xf] %v1162
          %1227 = vst [vmem:[%s955 + $0x38] sm:$0xf] %v1163
          %1228 = vst [vmem:[%s955 + $0x3c] sm:$0xf] %v1164
          %1229 = vst [vmem:[%s955 + $0x40] sm:$0xf] %v1165
          %1230 = vst [vmem:[%s955 + $0x44] sm:$0xf] %v1166
          %1231 = vst [vmem:[%s955 + $0x48] sm:$0xf] %v1167
          %1232 = vst [vmem:[%s955 + $0x4c] sm:$0xf] %v1168
          %1233 = vst [vmem:[%s955 + $0x50] sm:$0xf] %v1169
          %1234 = vst [vmem:[%s955 + $0x54] sm:$0xf] %v1170
          %1235 = vst [vmem:[%s955 + $0x58] sm:$0xf] %v1171
          %1236 = vst [vmem:[%s955 + $0x5c] sm:$0xf] %v1172
          %1237 = vst [vmem:[%s955 + $0x60] sm:$0xf] %v1173
          %1238 = vst [vmem:[%s955 + $0x64] sm:$0xf] %v1174
          %1239 = vst [vmem:[%s955 + $0x68] sm:$0xf] %v1175
          %1240 = vst [vmem:[%s955 + $0x6c] sm:$0xf] %v1176
          %1241 = vst [vmem:[%s955 + $0x70] sm:$0xf] %v1177
          %1242 = vst [vmem:[%s955 + $0x74] sm:$0xf] %v1178
          %1243 = vst [vmem:[%s955 + $0x78] sm:$0xf] %v1179
          %1244 = vst [vmem:[%s955 + $0x7c] sm:$0xf] %v1180
          %1245 = vst [vmem:[%s955 + $0x80] sm:$0xf] %v1181
          %1246 = vst [vmem:[%s955 + $0x84] sm:$0xf] %v1182
          %1247 = vst [vmem:[%s955 + $0x88] sm:$0xf] %v1183
          %1248 = vst [vmem:[%s955 + $0x8c] sm:$0xf] %v1184
          %1249 = vst [vmem:[%s955 + $0x90] sm:$0xf] %v1185
          %1250 = vst [vmem:[%s955 + $0x94] sm:$0xf] %v1186
          %1251 = vst [vmem:[%s955 + $0x98] sm:$0xf] %v1187
          %1252 = vst [vmem:[%s955 + $0x9c] sm:$0xf] %v1188
          %1253 = vst [vmem:[%s955 + $0xa0] sm:$0xf] %v1189
          %1254 = vst [vmem:[%s955 + $0xa4] sm:$0xf] %v1190
          %1255 = vst [vmem:[%s955 + $0xa8] sm:$0xf] %v1191
          %1256 = vst [vmem:[%s955 + $0xac] sm:$0xf] %v1192
          %1257 = vst [vmem:[%s955 + $0xb0] sm:$0xf] %v1193
          %1258 = vst [vmem:[%s955 + $0xb4] sm:$0xf] %v1194
          %1259 = vst [vmem:[%s955 + $0xb8] sm:$0xf] %v1195
          %1260 = vst [vmem:[%s955 + $0xbc] sm:$0xf] %v1196
          %1261 = vst [vmem:[%s955 + $0xc0] sm:$0xf] %v1197
          %1262 = vst [vmem:[%s955 + $0xc4] sm:$0xf] %v1198
          %1263 = vst [vmem:[%s955 + $0xc8] sm:$0xf] %v1199
          %1264 = vst [vmem:[%s955 + $0xcc] sm:$0xf] %v1200
          %1265 = vst [vmem:[%s955 + $0xd0] sm:$0xf] %v1201
          %1266 = vst [vmem:[%s955 + $0xd4] sm:$0xf] %v1202
          %1267 = vst [vmem:[%s955 + $0xd8] sm:$0xf] %v1203
          %1268 = vst [vmem:[%s955 + $0xdc] sm:$0xf] %v1204
          %1269 = vst [vmem:[%s955 + $0xe0] sm:$0xf] %v1205
          %1270 = vst [vmem:[%s955 + $0xe4] sm:$0xf] %v1206
          %1271 = vst [vmem:[%s955 + $0xe8] sm:$0xf] %v1207
          %1272 = vst [vmem:[%s955 + $0xec] sm:$0xf] %v1208
          %1273 = vst [vmem:[%s955 + $0xf0] sm:$0xf] %v1209
          %1274 = vst [vmem:[%s955 + $0xf4] sm:$0xf] %v1210
          %1275 = vst [vmem:[%s955 + $0xf8] sm:$0xf] %v1211
          %1276 = vst [vmem:[%s955 + $0xfc] sm:$0xf] %v1212
        $region61: #{conv3d_for_g_forward.3} parent=55 // loop_footer
          %s950 = sadd.s32 1, %s946
        $region62: #{conv3d_for_g_forward.3} parent=55 // loop_footer_branch
          %945 = sbr.rel target = $region58
        $region63: #{conv3d_for_g_forward.3} parent=55 // loop_exit
          _
      $region56: #{conv3d_for_g_forward.3} parent=47 // pred_fallthru
        _
      %p1277 = scmp.lt.s32.totalorder %s22, 1
      %s1278 = scalar_select %p1277, %s22, 1
      %s1279 = smul.addr %s1278, 128
      %s1280 = smul.addr %s1279, 4
      %s1281 = scalar_lea.vmem %s7, %s1280
      // Predicated region
      $region64: #{conv3d_for_g_forward.3} parent=47 // pred_check
        %p1282 = pneg %p202
      $region65: #{conv3d_for_g_forward.3} parent=47 // pred_check_branch
        %1284 = sbr.rel (%p1282) target = $region67
      $region66: #{conv3d_for_g_forward.3} parent=47 // pred_region
        _
      $region67: #{conv3d_for_g_forward.3} parent=47 // pred_fallthru
        _
    $region48: #{conv3d_for_g_forward.3} parent=5 // pred_fallthru
      _
    %p1285 = scmp.le.s32.totalorder 2, %s13
    // Predicated region
    $region68: #{conv3d_for_g_forward.3} parent=5 // pred_check
      %p1286 = pneg %p1285
    $region69: #{conv3d_for_g_forward.3} parent=5 // pred_check_branch
      %1288 = sbr.rel (%p1286) target = $region71
    $region70: #{conv3d_for_g_forward.3} parent=5 // pred_region
      %s1289 = ssub.s32 %s13, 2
      // Predicated region
      $region72: #{conv3d_for_g_forward.3} parent=70 // pred_check
        %p1290 = pneg %p208
      $region73: #{conv3d_for_g_forward.3} parent=70 // pred_check_branch
        %1292 = sbr.rel (%p1290) target = $region75
      $region74: #{conv3d_for_g_forward.3} parent=70 // pred_region
        %p1293 = scmp.lt.s32.totalorder %s24, 1
        %s1294 = scalar_select %p1293, %s24, 1
        %s1295 = smul.addr %s1294, 128
        %s1296 = smul.addr %s1295, 4
        %s1297 = scalar_lea.vmem %s7, %s1296
      $region75: #{conv3d_for_g_forward.3} parent=70 // pred_fallthru
        _
    $region71: #{conv3d_for_g_forward.3} parent=5 // pred_fallthru
      _
  $region6: #{conv3d_for_g_forward.3} parent=0 // loop_footer
    %s17 = sadd.s32 1, %s13
  $region7: #{conv3d_for_g_forward.3} parent=0 // loop_footer_branch
    %12 = sbr.rel target = $region3
  $region8: #{conv3d_for_g_forward.3} parent=0 // loop_exit
    _

</llo_original>
